<compile_context>
chip_gen: v6e
topology: v6e:2x2x1
jax: 0.10.0
libtpu: 0.0.40
codegen_flags: <defaults>
</compile_context>

<pallas_src>
import functools

import jax
import jax.numpy as jnp
import numpy as np
from jax.experimental import pallas as pl
from jax.experimental.pallas import tpu as pltpu


# ----------------------------------------------------------------------------
# Fused bidirectional-LSTM + Linear kernel.
# Gate/lane layout is gate-major, direction-minor:
#   [i_f i_b | f_f f_b | g_f g_b | o_f o_b], each sub-block H lanes wide.
# x2d / xproj / h_all are time-major 2-D slabs: row = t*B + b.
# ----------------------------------------------------------------------------
def _bilstm_lm_kernel(B, T, H,
                      x_ref, w_in_ref, w_rec_ref, b_ref,
                      w_out_f_ref, w_out_b_ref, b_out_ref,
                      p_fwd_ref, p_bwd_ref,
                      out_ref,
                      xproj_ref, h_all_ref):
    f32 = jnp.float32
    H2 = 2 * H              # fwd|bwd hidden width
    G = 8 * H               # 4 gates x 2 directions

    # ---- hoisted input projection: one (T*B, E) @ (E, 8H) matmul, bias folded
    xproj_ref[...] = (
        jnp.dot(x_ref[...], w_in_ref[...], preferred_element_type=f32)
        + b_ref[...])

    # Static lane masks (built once, full-vreg ops — no 32-lane slicing for the
    # transcendentals).
    lane = jax.lax.broadcasted_iota(jnp.int32, (B, G), 1)
    fwd_lane = (lane % H2) < H                       # forward-direction lanes
    g_lane = (lane >= 2 * H2) & (lane < 3 * H2)      # cell-candidate gate lanes

    w_rec = w_rec_ref[...]                           # block-diagonal (2H, 8H)

    def step(s, carry):
        h, c = carry                                 # (B, 2H) each, in vregs
        row_f = pl.multiple_of(s * B, B)             # time s        (forward)
        row_b = pl.multiple_of((T - 1 - s) * B, B)   # time T-1-s    (backward)
        xp = jnp.where(fwd_lane,
                       xproj_ref[pl.ds(row_f, B), :],
                       xproj_ref[pl.ds(row_b, B), :])
        gates = xp + jnp.dot(h, w_rec, preferred_element_type=f32)   # (B, 8H)
        act = jnp.where(g_lane, jnp.tanh(gates), jax.nn.sigmoid(gates))
        i_g = act[:, 0:H2]
        f_g = act[:, H2:2 * H2]
        g_g = act[:, 2 * H2:3 * H2]
        o_g = act[:, 3 * H2:4 * H2]
        c_new = f_g * c + i_g * g_g
        h_new = o_g * jnp.tanh(c_new)
        # fwd half belongs to time s, bwd half to time T-1-s; store the combined
        # (B, 2H) at time-major block s and undo the bwd time-reversal in the
        # epilogue permutation.
        h_all_ref[pl.ds(row_f, B), :] = h_new
        return h_new, c_new

    zeros = jnp.zeros((B, H2), f32)
    jax.lax.fori_loop(0, T, step, (zeros, zeros), unroll=True)

    # ---- epilogue: (t, b) -> (b, t) row reorder + fused output Linear --------
    h_all = h_all_ref[...]                           # (T*B, 2H), time-major
    hf_bt = jnp.dot(p_fwd_ref[...], h_all[:, 0:H], preferred_element_type=f32)
    hb_bt = jnp.dot(p_bwd_ref[...], h_all[:, H:H2], preferred_element_type=f32)
    out_ref[...] = (
        jnp.dot(hf_bt, w_out_f_ref[...], preferred_element_type=f32)
        + jnp.dot(hb_bt, w_out_b_ref[...], preferred_element_type=f32)
        + b_out_ref[...])


# ----------------------------------------------------------------------------
# Full forward: embedding gather + weight packing stay in JAX (glue), the
# entire bi-LSTM recurrence + output Linear run in one Pallas kernel.
# ----------------------------------------------------------------------------
def grulm_forward(params, inputs):
    B, T = inputs.shape
    V, E = params["embedding"].shape
    H = params["whh_f"].shape[1]
    TB, H2, G = T * B, 2 * H, 8 * H

    # Embedding lookup (gather) kept in plain JAX — glue, not the hot path.
    emb = jnp.take(params["embedding"], inputs, axis=0)            # (B, T, E)
    x2d = jnp.transpose(emb, (1, 0, 2)).reshape(TB, E)             # row = t*B+b

    # ---- pack weights: gate-major, direction-minor columns ------------------
    def pack_in(wf, wb):                                           # (4H,E)->(E,8H)
        wf4 = wf.reshape(4, H, E)
        wb4 = wb.reshape(4, H, E)
        w = jnp.concatenate([wf4, wb4], axis=1)                    # (4, 2H, E)
        return jnp.transpose(w, (2, 0, 1)).reshape(E, G)

    w_in = pack_in(params["wih_f"], params["wih_b"])

    rfT = jnp.transpose(params["whh_f"].reshape(4, H, H), (0, 2, 1))
    rbT = jnp.transpose(params["whh_b"].reshape(4, H, H), (0, 2, 1))
    z = jnp.zeros_like(rfT)
    w_rec = jnp.concatenate([jnp.concatenate([rfT, z], axis=2),
                             jnp.concatenate([z, rbT], axis=2)], axis=1)
    w_rec = jnp.transpose(w_rec, (1, 0, 2)).reshape(H2, G)         # block-diag

    bf = (params["bih_f"] + params["bhh_f"]).reshape(4, H)
    bb = (params["bih_b"] + params["bhh_b"]).reshape(4, H)
    b_all = jnp.concatenate([bf, bb], axis=1).reshape(1, G)

    w_out = params["lin_w"].T                                      # (2H, V)
    w_out_f, w_out_b = w_out[:H, :], w_out[H:, :]
    b_out = params["lin_b"].reshape(1, V)

    # ---- exact one-hot row-permutation matrices for (t,b) -> (b,t) ----------
    r = jnp.arange(TB)
    t_of, b_of = r % T, r // T
    p_fwd = jax.nn.one_hot(t_of * B + b_of, TB, dtype=jnp.float32)
    p_bwd = jax.nn.one_hot((T - 1 - t_of) * B + b_of, TB, dtype=jnp.float32)

    flops = (2 * TB * E * G                      # input projection
             + T * 2 * B * H2 * G                # recurrence
             + 2 * 2 * TB * TB * H               # permutation matmuls
             + 2 * 2 * TB * H * V)               # output linear
    cost = pl.CostEstimate(
        flops=flops,
        transcendentals=T * B * (2 * G + H2),
        bytes_accessed=4 * (TB * E + E * G + H2 * G + G + 2 * H * V + V
                            + 2 * TB * TB + TB * V))

    kernel = functools.partial(_bilstm_lm_kernel, B, T, H)
    logits = pl.pallas_call(
        kernel,
        out_shape=jax.ShapeDtypeStruct((B * T, V), jnp.float32),
        scratch_shapes=[pltpu.VMEM((TB, G), jnp.float32),          # xproj
                        pltpu.VMEM((TB, H2), jnp.float32)],        # hidden hist
        cost_estimate=cost,
    )(x2d, w_in, w_rec, b_all, w_out_f, w_out_b, b_out, p_fwd, p_bwd)
    return logits


# ----------------------------------------------------------------------------
# Pure-JAX reference (for correctness check).
# ----------------------------------------------------------------------------
def lstm_dir_ref(x_tbe, wih, whh, b_ih, b_hh, reverse=False):
    T, B, _ = x_tbe.shape
    H = whh.shape[1]

    def step(carry, x):
        h, c = carry
        gates = x @ wih.T + b_ih + h @ whh.T + b_hh
        i, f, g, o = jnp.split(gates, 4, axis=-1)
        i = jax.nn.sigmoid(i)
        f = jax.nn.sigmoid(f)
        g = jnp.tanh(g)
        o = jax.nn.sigmoid(o)
        c = f * c + i * g
        h = o * jnp.tanh(c)
        return (h, c), h

    xs = x_tbe[::-1] if reverse else x_tbe
    _, hs = jax.lax.scan(step, (jnp.zeros((B, H)), jnp.zeros((B, H))), xs)
    return hs[::-1] if reverse else hs


def grulm_forward_ref(params, inputs):
    B, T = inputs.shape
    emb = jnp.take(params["embedding"], inputs, axis=0)
    x_tbe = jnp.transpose(emb, (1, 0, 2))
    hf = lstm_dir_ref(x_tbe, params["wih_f"], params["whh_f"],
                      params["bih_f"], params["bhh_f"], reverse=False)
    hb = lstm_dir_ref(x_tbe, params["wih_b"], params["whh_b"],
                      params["bih_b"], params["bhh_b"], reverse=True)
    out = jnp.concatenate([jnp.transpose(hf, (1, 0, 2)),
                           jnp.transpose(hb, (1, 0, 2))], axis=-1)
    out = out.reshape(B * T, -1)
    return out @ params["lin_w"].T + params["lin_b"]


# ----------------------------------------------------------------------------
# Deterministic parameter init (mirrors nn.Embedding/nn.LSTM/nn.Linear shapes).
# ----------------------------------------------------------------------------
def init_params(key, vocab_size, embed_dim, hidden_size):
    ks = jax.random.split(key, 12)
    k = 1.0 / np.sqrt(hidden_size)
    u = lambda kk, shape, lo, hi: jax.random.uniform(
        kk, shape, jnp.float32, lo, hi)
    H, E, V = hidden_size, embed_dim, vocab_size
    return {
        "embedding": u(ks[0], (V, E), -0.1, 0.1),
        # forward direction
        "wih_f": u(ks[1], (4 * H, E), -k, k),
        "whh_f": u(ks[2], (4 * H, H), -k, k),
        "bih_f": u(ks[3], (4 * H,), -k, k),
        "bhh_f": u(ks[4], (4 * H,), -k, k),
        # reverse direction
        "wih_b": u(ks[5], (4 * H, E), -k, k),
        "whh_b": u(ks[6], (4 * H, H), -k, k),
        "bih_b": u(ks[7], (4 * H,), -k, k),
        "bhh_b": u(ks[8], (4 * H,), -k, k),
        # output linear: weight uniform(-0.1, 0.1), bias zeros (init_weights)
        "lin_w": u(ks[9], (V, 2 * H), -0.1, 0.1),
        "lin_b": jnp.zeros((V,), jnp.float32),
    }


if __name__ == "__main__":
    B, T = 8, 8            # batch, sequence length
    E, H, V = 16, 32, 128  # embedding_dim, hidden_size, vocab_size

    key = jax.random.PRNGKey(0)
    kp, ki = jax.random.split(key)
    params = init_params(kp, V, E, H)
    inputs = jax.random.randint(ki, (B, T), 0, V, dtype=jnp.int32)

    fwd = jax.jit(grulm_forward)
    logits = jax.block_until_ready(fwd(params, inputs))
    ref = jax.block_until_ready(grulm_forward_ref(params, inputs))

    assert logits.shape == (B * T, V), logits.shape
    np.testing.assert_allclose(np.asarray(logits), np.asarray(ref),
                               rtol=2e-4, atol=2e-4)
    print("KERNEL_OK")
</pallas_src>

<mosaic_0001>
module attributes {stable_mosaic.version = 11 : i64} {
  func.func @_bilstm_lm_kernel(%arg0: memref<64x16xf32, #tpu.memory_space<vmem>>, %arg1: memref<16x256xf32, #tpu.memory_space<vmem>>, %arg2: memref<64x256xf32, #tpu.memory_space<vmem>>, %arg3: memref<1x256xf32, #tpu.memory_space<vmem>>, %arg4: memref<32x128xf32, #tpu.memory_space<vmem>>, %arg5: memref<32x128xf32, #tpu.memory_space<vmem>>, %arg6: memref<1x128xf32, #tpu.memory_space<vmem>>, %arg7: memref<64x64xf32, #tpu.memory_space<vmem>>, %arg8: memref<64x64xf32, #tpu.memory_space<vmem>>, %arg9: memref<64x128xf32, #tpu.memory_space<vmem>>, %arg10: memref<64x256xf32, #tpu.memory_space<vmem>>, %arg11: memref<64x64xf32, #tpu.memory_space<vmem>>) attributes {dimension_semantics = [], scalar_prefetch = 0 : i64, scratch_operands = 2 : i64, tpu.core_type = #tpu.core_type<tc>} {
    %c0 = arith.constant 0 : index
    %c0_0 = arith.constant 0 : index
    %0 = vector.load %arg0[%c0, %c0_0] : memref<64x16xf32, #tpu.memory_space<vmem>>, vector<64x16xf32>
    %c0_1 = arith.constant 0 : index
    %c0_2 = arith.constant 0 : index
    %1 = vector.load %arg1[%c0_1, %c0_2] : memref<16x256xf32, #tpu.memory_space<vmem>>, vector<16x256xf32>
    %cst = arith.constant dense<0.000000e+00> : vector<64x256xf32>
    %2 = tpu.matmul %0, %1, %cst {dimension_numbers = #tpu.dot_dimension_numbers<[1], [0], [0], [1], [0, 0, 1, 1], [], []>} : vector<64x16xf32>, vector<16x256xf32>, vector<64x256xf32> -> vector<64x256xf32>
    %c0_3 = arith.constant 0 : index
    %c0_4 = arith.constant 0 : index
    %3 = vector.load %arg3[%c0_3, %c0_4] : memref<1x256xf32, #tpu.memory_space<vmem>>, vector<1x256xf32>
    %4 = vector.broadcast %3 : vector<1x256xf32> to vector<64x256xf32>
    %5 = arith.addf %2, %4 : vector<64x256xf32>
    %c0_5 = arith.constant 0 : index
    %c0_6 = arith.constant 0 : index
    %6 = vector.load %arg10[%c0_5, %c0_6] : memref<64x256xf32, #tpu.memory_space<vmem>>, vector<64x256xf32>
    tpu.vector_store %arg10[%c0_5, %c0_6], %5 {strides = array<i32>} : memref<64x256xf32, #tpu.memory_space<vmem>>, vector<64x256xf32>,
    %7 = tpu.iota {dimensions = array<i32: 1>} : vector<8x256xi32>
    %c64_i32 = arith.constant 64 : i32
    %c0_i32 = arith.constant 0 : i32
    %8 = arith.cmpi eq, %c64_i32, %c0_i32 : i32
    %c1_i32 = arith.constant 1 : i32
    %9 = arith.select %8, %c1_i32, %c64_i32 : i32
    %10 = vector.broadcast %9 : i32 to vector<8x256xi32>
    %11 = arith.remsi %7, %10 : vector<8x256xi32>
    %c0_i32_7 = arith.constant 0 : i32
    %12 = vector.broadcast %c0_i32_7 : i32 to vector<8x256xi32>
    %13 = arith.cmpi ne, %11, %12 : vector<8x256xi32>
    %c0_i32_8 = arith.constant 0 : i32
    %14 = vector.broadcast %c0_i32_8 : i32 to vector<8x256xi32>
    %15 = arith.cmpi slt, %11, %14 : vector<8x256xi32>
    %c0_i32_9 = arith.constant 0 : i32
    %16 = arith.cmpi slt, %9, %c0_i32_9 : i32
    %17 = vector.broadcast %16 : i1 to vector<8x256xi1>
    %18 = vector.broadcast %17 : vector<8x256xi1> to vector<8x256xi1>
    %19 = arith.xori %15, %18 : vector<8x256xi1>
    %20 = arith.andi %19, %13 : vector<8x256xi1>
    %21 = vector.broadcast %9 : i32 to vector<8x256xi32>
    %22 = arith.addi %11, %21 : vector<8x256xi32>
    %23 = arith.select %20, %22, %11 : vector<8x256xi1>, vector<8x256xi32>
    %c32_i32 = arith.constant 32 : i32
    %24 = vector.broadcast %c32_i32 : i32 to vector<8x256xi32>
    %25 = arith.cmpi slt, %23, %24 : vector<8x256xi32>
    %c128_i32 = arith.constant 128 : i32
    %26 = vector.broadcast %c128_i32 : i32 to vector<8x256xi32>
    %27 = arith.cmpi sge, %7, %26 : vector<8x256xi32>
    %c192_i32 = arith.constant 192 : i32
    %28 = vector.broadcast %c192_i32 : i32 to vector<8x256xi32>
    %29 = arith.cmpi slt, %7, %28 : vector<8x256xi32>
    %30 = arith.andi %27, %29 : vector<8x256xi1>
    %c0_10 = arith.constant 0 : index
    %c0_11 = arith.constant 0 : index
    %31 = vector.load %arg2[%c0_10, %c0_11] : memref<64x256xf32, #tpu.memory_space<vmem>>, vector<64x256xf32>
    %cst_12 = arith.constant 0.000000e+00 : f32
    %32 = vector.broadcast %cst_12 : f32 to vector<8x64xf32>
    %c0_i32_13 = arith.constant 0 : i32
    %c8_i32 = arith.constant 8 : i32
    %33 = arith.muli %c0_i32_13, %c8_i32 : i32
    %34 = tpu.assume_multiple %33, 8 : i32
    %c7_i32 = arith.constant 7 : i32
    %35 = arith.subi %c7_i32, %c0_i32_13 : i32
    %c8_i32_14 = arith.constant 8 : i32
    %36 = arith.muli %35, %c8_i32_14 : i32
    %37 = tpu.assume_multiple %36, 8 : i32
    %38 = arith.index_cast %34 : i32 to index
    %c0_15 = arith.constant 0 : index
    %39 = vector.load %arg10[%38, %c0_15] : memref<64x256xf32, #tpu.memory_space<vmem>>, vector<8x256xf32>
    %40 = arith.index_cast %37 : i32 to index
    %c0_16 = arith.constant 0 : index
    %41 = vector.load %arg10[%40, %c0_16] : memref<64x256xf32, #tpu.memory_space<vmem>>, vector<8x256xf32>
    %42 = arith.select %25, %39, %41 : vector<8x256xi1>, vector<8x256xf32>
    %cst_17 = arith.constant dense<0.000000e+00> : vector<8x256xf32>
    %43 = tpu.matmul %32, %31, %cst_17 {dimension_numbers = #tpu.dot_dimension_numbers<[1], [0], [0], [1], [0, 0, 1, 1], [], []>} : vector<8x64xf32>, vector<64x256xf32>, vector<8x256xf32> -> vector<8x256xf32>
    %44 = arith.addf %42, %43 : vector<8x256xf32>
    %45 = math.tanh %44 : vector<8x256xf32>
    %46 = arith.negf %44 : vector<8x256xf32>
    %47 = math.exp %46 : vector<8x256xf32>
    %cst_18 = arith.constant 1.000000e+00 : f32
    %48 = vector.broadcast %cst_18 : f32 to vector<8x256xf32>
    %49 = arith.addf %48, %47 : vector<8x256xf32>
    %50 = arith.divf %48, %49 : vector<8x256xf32>
    %51 = arith.select %30, %45, %50 : vector<8x256xi1>, vector<8x256xf32>
    %52 = vector.extract_strided_slice %51 {offsets = [0, 0], sizes = [8, 64], strides = [1, 1]} : vector<8x256xf32> to vector<8x64xf32>
    %53 = vector.extract_strided_slice %51 {offsets = [0, 64], sizes = [8, 64], strides = [1, 1]} : vector<8x256xf32> to vector<8x64xf32>
    %54 = vector.extract_strided_slice %51 {offsets = [0, 128], sizes = [8, 64], strides = [1, 1]} : vector<8x256xf32> to vector<8x64xf32>
    %55 = vector.extract_strided_slice %51 {offsets = [0, 192], sizes = [8, 64], strides = [1, 1]} : vector<8x256xf32> to vector<8x64xf32>
    %56 = arith.mulf %53, %32 : vector<8x64xf32>
    %57 = arith.mulf %52, %54 : vector<8x64xf32>
    %58 = arith.addf %56, %57 : vector<8x64xf32>
    %59 = math.tanh %58 : vector<8x64xf32>
    %60 = arith.mulf %55, %59 : vector<8x64xf32>
    %61 = arith.index_cast %34 : i32 to index
    %c0_19 = arith.constant 0 : index
    %62 = vector.load %arg11[%61, %c0_19] : memref<64x64xf32, #tpu.memory_space<vmem>>, vector<8x64xf32>
    tpu.vector_store %arg11[%61, %c0_19], %60 {strides = array<i32>} : memref<64x64xf32, #tpu.memory_space<vmem>>, vector<8x64xf32>,
    %c1_i32_20 = arith.constant 1 : i32
    %c8_i32_21 = arith.constant 8 : i32
    %63 = arith.muli %c1_i32_20, %c8_i32_21 : i32
    %64 = tpu.assume_multiple %63, 8 : i32
    %c7_i32_22 = arith.constant 7 : i32
    %65 = arith.subi %c7_i32_22, %c1_i32_20 : i32
    %c8_i32_23 = arith.constant 8 : i32
    %66 = arith.muli %65, %c8_i32_23 : i32
    %67 = tpu.assume_multiple %66, 8 : i32
    %68 = arith.index_cast %64 : i32 to index
    %c0_24 = arith.constant 0 : index
    %69 = vector.load %arg10[%68, %c0_24] : memref<64x256xf32, #tpu.memory_space<vmem>>, vector<8x256xf32>
    %70 = arith.index_cast %67 : i32 to index
    %c0_25 = arith.constant 0 : index
    %71 = vector.load %arg10[%70, %c0_25] : memref<64x256xf32, #tpu.memory_space<vmem>>, vector<8x256xf32>
    %72 = arith.select %25, %69, %71 : vector<8x256xi1>, vector<8x256xf32>
    %cst_26 = arith.constant dense<0.000000e+00> : vector<8x256xf32>
    %73 = tpu.matmul %60, %31, %cst_26 {dimension_numbers = #tpu.dot_dimension_numbers<[1], [0], [0], [1], [0, 0, 1, 1], [], []>} : vector<8x64xf32>, vector<64x256xf32>, vector<8x256xf32> -> vector<8x256xf32>
    %74 = arith.addf %72, %73 : vector<8x256xf32>
    %75 = math.tanh %74 : vector<8x256xf32>
    %76 = arith.negf %74 : vector<8x256xf32>
    %77 = math.exp %76 : vector<8x256xf32>
    %cst_27 = arith.constant 1.000000e+00 : f32
    %78 = vector.broadcast %cst_27 : f32 to vector<8x256xf32>
    %79 = arith.addf %78, %77 : vector<8x256xf32>
    %80 = arith.divf %78, %79 : vector<8x256xf32>
    %81 = arith.select %30, %75, %80 : vector<8x256xi1>, vector<8x256xf32>
    %82 = vector.extract_strided_slice %81 {offsets = [0, 0], sizes = [8, 64], strides = [1, 1]} : vector<8x256xf32> to vector<8x64xf32>
    %83 = vector.extract_strided_slice %81 {offsets = [0, 64], sizes = [8, 64], strides = [1, 1]} : vector<8x256xf32> to vector<8x64xf32>
    %84 = vector.extract_strided_slice %81 {offsets = [0, 128], sizes = [8, 64], strides = [1, 1]} : vector<8x256xf32> to vector<8x64xf32>
    %85 = vector.extract_strided_slice %81 {offsets = [0, 192], sizes = [8, 64], strides = [1, 1]} : vector<8x256xf32> to vector<8x64xf32>
    %86 = arith.mulf %83, %58 : vector<8x64xf32>
    %87 = arith.mulf %82, %84 : vector<8x64xf32>
    %88 = arith.addf %86, %87 : vector<8x64xf32>
    %89 = math.tanh %88 : vector<8x64xf32>
    %90 = arith.mulf %85, %89 : vector<8x64xf32>
    %91 = arith.index_cast %64 : i32 to index
    %c0_28 = arith.constant 0 : index
    %92 = vector.load %arg11[%91, %c0_28] : memref<64x64xf32, #tpu.memory_space<vmem>>, vector<8x64xf32>
    tpu.vector_store %arg11[%91, %c0_28], %90 {strides = array<i32>} : memref<64x64xf32, #tpu.memory_space<vmem>>, vector<8x64xf32>,
    %c2_i32 = arith.constant 2 : i32
    %c8_i32_29 = arith.constant 8 : i32
    %93 = arith.muli %c2_i32, %c8_i32_29 : i32
    %94 = tpu.assume_multiple %93, 8 : i32
    %c7_i32_30 = arith.constant 7 : i32
    %95 = arith.subi %c7_i32_30, %c2_i32 : i32
    %c8_i32_31 = arith.constant 8 : i32
    %96 = arith.muli %95, %c8_i32_31 : i32
    %97 = tpu.assume_multiple %96, 8 : i32
    %98 = arith.index_cast %94 : i32 to index
    %c0_32 = arith.constant 0 : index
    %99 = vector.load %arg10[%98, %c0_32] : memref<64x256xf32, #tpu.memory_space<vmem>>, vector<8x256xf32>
    %100 = arith.index_cast %97 : i32 to index
    %c0_33 = arith.constant 0 : index
    %101 = vector.load %arg10[%100, %c0_33] : memref<64x256xf32, #tpu.memory_space<vmem>>, vector<8x256xf32>
    %102 = arith.select %25, %99, %101 : vector<8x256xi1>, vector<8x256xf32>
    %cst_34 = arith.constant dense<0.000000e+00> : vector<8x256xf32>
    %103 = tpu.matmul %90, %31, %cst_34 {dimension_numbers = #tpu.dot_dimension_numbers<[1], [0], [0], [1], [0, 0, 1, 1], [], []>} : vector<8x64xf32>, vector<64x256xf32>, vector<8x256xf32> -> vector<8x256xf32>
    %104 = arith.addf %102, %103 : vector<8x256xf32>
    %105 = math.tanh %104 : vector<8x256xf32>
    %106 = arith.negf %104 : vector<8x256xf32>
    %107 = math.exp %106 : vector<8x256xf32>
    %cst_35 = arith.constant 1.000000e+00 : f32
    %108 = vector.broadcast %cst_35 : f32 to vector<8x256xf32>
    %109 = arith.addf %108, %107 : vector<8x256xf32>
    %110 = arith.divf %108, %109 : vector<8x256xf32>
    %111 = arith.select %30, %105, %110 : vector<8x256xi1>, vector<8x256xf32>
    %112 = vector.extract_strided_slice %111 {offsets = [0, 0], sizes = [8, 64], strides = [1, 1]} : vector<8x256xf32> to vector<8x64xf32>
    %113 = vector.extract_strided_slice %111 {offsets = [0, 64], sizes = [8, 64], strides = [1, 1]} : vector<8x256xf32> to vector<8x64xf32>
    %114 = vector.extract_strided_slice %111 {offsets = [0, 128], sizes = [8, 64], strides = [1, 1]} : vector<8x256xf32> to vector<8x64xf32>
    %115 = vector.extract_strided_slice %111 {offsets = [0, 192], sizes = [8, 64], strides = [1, 1]} : vector<8x256xf32> to vector<8x64xf32>
    %116 = arith.mulf %113, %88 : vector<8x64xf32>
    %117 = arith.mulf %112, %114 : vector<8x64xf32>
    %118 = arith.addf %116, %117 : vector<8x64xf32>
    %119 = math.tanh %118 : vector<8x64xf32>
    %120 = arith.mulf %115, %119 : vector<8x64xf32>
    %121 = arith.index_cast %94 : i32 to index
    %c0_36 = arith.constant 0 : index
    %122 = vector.load %arg11[%121, %c0_36] : memref<64x64xf32, #tpu.memory_space<vmem>>, vector<8x64xf32>
    tpu.vector_store %arg11[%121, %c0_36], %120 {strides = array<i32>} : memref<64x64xf32, #tpu.memory_space<vmem>>, vector<8x64xf32>,
    %c3_i32 = arith.constant 3 : i32
    %c8_i32_37 = arith.constant 8 : i32
    %123 = arith.muli %c3_i32, %c8_i32_37 : i32
    %124 = tpu.assume_multiple %123, 8 : i32
    %c7_i32_38 = arith.constant 7 : i32
    %125 = arith.subi %c7_i32_38, %c3_i32 : i32
    %c8_i32_39 = arith.constant 8 : i32
    %126 = arith.muli %125, %c8_i32_39 : i32
    %127 = tpu.assume_multiple %126, 8 : i32
    %128 = arith.index_cast %124 : i32 to index
    %c0_40 = arith.constant 0 : index
    %129 = vector.load %arg10[%128, %c0_40] : memref<64x256xf32, #tpu.memory_space<vmem>>, vector<8x256xf32>
    %130 = arith.index_cast %127 : i32 to index
    %c0_41 = arith.constant 0 : index
    %131 = vector.load %arg10[%130, %c0_41] : memref<64x256xf32, #tpu.memory_space<vmem>>, vector<8x256xf32>
    %132 = arith.select %25, %129, %131 : vector<8x256xi1>, vector<8x256xf32>
    %cst_42 = arith.constant dense<0.000000e+00> : vector<8x256xf32>
    %133 = tpu.matmul %120, %31, %cst_42 {dimension_numbers = #tpu.dot_dimension_numbers<[1], [0], [0], [1], [0, 0, 1, 1], [], []>} : vector<8x64xf32>, vector<64x256xf32>, vector<8x256xf32> -> vector<8x256xf32>
    %134 = arith.addf %132, %133 : vector<8x256xf32>
    %135 = math.tanh %134 : vector<8x256xf32>
    %136 = arith.negf %134 : vector<8x256xf32>
    %137 = math.exp %136 : vector<8x256xf32>
    %cst_43 = arith.constant 1.000000e+00 : f32
    %138 = vector.broadcast %cst_43 : f32 to vector<8x256xf32>
    %139 = arith.addf %138, %137 : vector<8x256xf32>
    %140 = arith.divf %138, %139 : vector<8x256xf32>
    %141 = arith.select %30, %135, %140 : vector<8x256xi1>, vector<8x256xf32>
    %142 = vector.extract_strided_slice %141 {offsets = [0, 0], sizes = [8, 64], strides = [1, 1]} : vector<8x256xf32> to vector<8x64xf32>
    %143 = vector.extract_strided_slice %141 {offsets = [0, 64], sizes = [8, 64], strides = [1, 1]} : vector<8x256xf32> to vector<8x64xf32>
    %144 = vector.extract_strided_slice %141 {offsets = [0, 128], sizes = [8, 64], strides = [1, 1]} : vector<8x256xf32> to vector<8x64xf32>
    %145 = vector.extract_strided_slice %141 {offsets = [0, 192], sizes = [8, 64], strides = [1, 1]} : vector<8x256xf32> to vector<8x64xf32>
    %146 = arith.mulf %143, %118 : vector<8x64xf32>
    %147 = arith.mulf %142, %144 : vector<8x64xf32>
    %148 = arith.addf %146, %147 : vector<8x64xf32>
    %149 = math.tanh %148 : vector<8x64xf32>
    %150 = arith.mulf %145, %149 : vector<8x64xf32>
    %151 = arith.index_cast %124 : i32 to index
    %c0_44 = arith.constant 0 : index
    %152 = vector.load %arg11[%151, %c0_44] : memref<64x64xf32, #tpu.memory_space<vmem>>, vector<8x64xf32>
    tpu.vector_store %arg11[%151, %c0_44], %150 {strides = array<i32>} : memref<64x64xf32, #tpu.memory_space<vmem>>, vector<8x64xf32>,
    %c4_i32 = arith.constant 4 : i32
    %c8_i32_45 = arith.constant 8 : i32
    %153 = arith.muli %c4_i32, %c8_i32_45 : i32
    %154 = tpu.assume_multiple %153, 8 : i32
    %c7_i32_46 = arith.constant 7 : i32
    %155 = arith.subi %c7_i32_46, %c4_i32 : i32
    %c8_i32_47 = arith.constant 8 : i32
    %156 = arith.muli %155, %c8_i32_47 : i32
    %157 = tpu.assume_multiple %156, 8 : i32
    %158 = arith.index_cast %154 : i32 to index
    %c0_48 = arith.constant 0 : index
    %159 = vector.load %arg10[%158, %c0_48] : memref<64x256xf32, #tpu.memory_space<vmem>>, vector<8x256xf32>
    %160 = arith.index_cast %157 : i32 to index
    %c0_49 = arith.constant 0 : index
    %161 = vector.load %arg10[%160, %c0_49] : memref<64x256xf32, #tpu.memory_space<vmem>>, vector<8x256xf32>
    %162 = arith.select %25, %159, %161 : vector<8x256xi1>, vector<8x256xf32>
    %cst_50 = arith.constant dense<0.000000e+00> : vector<8x256xf32>
    %163 = tpu.matmul %150, %31, %cst_50 {dimension_numbers = #tpu.dot_dimension_numbers<[1], [0], [0], [1], [0, 0, 1, 1], [], []>} : vector<8x64xf32>, vector<64x256xf32>, vector<8x256xf32> -> vector<8x256xf32>
    %164 = arith.addf %162, %163 : vector<8x256xf32>
    %165 = math.tanh %164 : vector<8x256xf32>
    %166 = arith.negf %164 : vector<8x256xf32>
    %167 = math.exp %166 : vector<8x256xf32>
    %cst_51 = arith.constant 1.000000e+00 : f32
    %168 = vector.broadcast %cst_51 : f32 to vector<8x256xf32>
    %169 = arith.addf %168, %167 : vector<8x256xf32>
    %170 = arith.divf %168, %169 : vector<8x256xf32>
    %171 = arith.select %30, %165, %170 : vector<8x256xi1>, vector<8x256xf32>
    %172 = vector.extract_strided_slice %171 {offsets = [0, 0], sizes = [8, 64], strides = [1, 1]} : vector<8x256xf32> to vector<8x64xf32>
    %173 = vector.extract_strided_slice %171 {offsets = [0, 64], sizes = [8, 64], strides = [1, 1]} : vector<8x256xf32> to vector<8x64xf32>
    %174 = vector.extract_strided_slice %171 {offsets = [0, 128], sizes = [8, 64], strides = [1, 1]} : vector<8x256xf32> to vector<8x64xf32>
    %175 = vector.extract_strided_slice %171 {offsets = [0, 192], sizes = [8, 64], strides = [1, 1]} : vector<8x256xf32> to vector<8x64xf32>
    %176 = arith.mulf %173, %148 : vector<8x64xf32>
    %177 = arith.mulf %172, %174 : vector<8x64xf32>
    %178 = arith.addf %176, %177 : vector<8x64xf32>
    %179 = math.tanh %178 : vector<8x64xf32>
    %180 = arith.mulf %175, %179 : vector<8x64xf32>
    %181 = arith.index_cast %154 : i32 to index
    %c0_52 = arith.constant 0 : index
    %182 = vector.load %arg11[%181, %c0_52] : memref<64x64xf32, #tpu.memory_space<vmem>>, vector<8x64xf32>
    tpu.vector_store %arg11[%181, %c0_52], %180 {strides = array<i32>} : memref<64x64xf32, #tpu.memory_space<vmem>>, vector<8x64xf32>,
    %c5_i32 = arith.constant 5 : i32
    %c8_i32_53 = arith.constant 8 : i32
    %183 = arith.muli %c5_i32, %c8_i32_53 : i32
    %184 = tpu.assume_multiple %183, 8 : i32
    %c7_i32_54 = arith.constant 7 : i32
    %185 = arith.subi %c7_i32_54, %c5_i32 : i32
    %c8_i32_55 = arith.constant 8 : i32
    %186 = arith.muli %185, %c8_i32_55 : i32
    %187 = tpu.assume_multiple %186, 8 : i32
    %188 = arith.index_cast %184 : i32 to index
    %c0_56 = arith.constant 0 : index
    %189 = vector.load %arg10[%188, %c0_56] : memref<64x256xf32, #tpu.memory_space<vmem>>, vector<8x256xf32>
    %190 = arith.index_cast %187 : i32 to index
    %c0_57 = arith.constant 0 : index
    %191 = vector.load %arg10[%190, %c0_57] : memref<64x256xf32, #tpu.memory_space<vmem>>, vector<8x256xf32>
    %192 = arith.select %25, %189, %191 : vector<8x256xi1>, vector<8x256xf32>
    %cst_58 = arith.constant dense<0.000000e+00> : vector<8x256xf32>
    %193 = tpu.matmul %180, %31, %cst_58 {dimension_numbers = #tpu.dot_dimension_numbers<[1], [0], [0], [1], [0, 0, 1, 1], [], []>} : vector<8x64xf32>, vector<64x256xf32>, vector<8x256xf32> -> vector<8x256xf32>
    %194 = arith.addf %192, %193 : vector<8x256xf32>
    %195 = math.tanh %194 : vector<8x256xf32>
    %196 = arith.negf %194 : vector<8x256xf32>
    %197 = math.exp %196 : vector<8x256xf32>
    %cst_59 = arith.constant 1.000000e+00 : f32
    %198 = vector.broadcast %cst_59 : f32 to vector<8x256xf32>
    %199 = arith.addf %198, %197 : vector<8x256xf32>
    %200 = arith.divf %198, %199 : vector<8x256xf32>
    %201 = arith.select %30, %195, %200 : vector<8x256xi1>, vector<8x256xf32>
    %202 = vector.extract_strided_slice %201 {offsets = [0, 0], sizes = [8, 64], strides = [1, 1]} : vector<8x256xf32> to vector<8x64xf32>
    %203 = vector.extract_strided_slice %201 {offsets = [0, 64], sizes = [8, 64], strides = [1, 1]} : vector<8x256xf32> to vector<8x64xf32>
    %204 = vector.extract_strided_slice %201 {offsets = [0, 128], sizes = [8, 64], strides = [1, 1]} : vector<8x256xf32> to vector<8x64xf32>
    %205 = vector.extract_strided_slice %201 {offsets = [0, 192], sizes = [8, 64], strides = [1, 1]} : vector<8x256xf32> to vector<8x64xf32>
    %206 = arith.mulf %203, %178 : vector<8x64xf32>
    %207 = arith.mulf %202, %204 : vector<8x64xf32>
    %208 = arith.addf %206, %207 : vector<8x64xf32>
    %209 = math.tanh %208 : vector<8x64xf32>
    %210 = arith.mulf %205, %209 : vector<8x64xf32>
    %211 = arith.index_cast %184 : i32 to index
    %c0_60 = arith.constant 0 : index
    %212 = vector.load %arg11[%211, %c0_60] : memref<64x64xf32, #tpu.memory_space<vmem>>, vector<8x64xf32>
    tpu.vector_store %arg11[%211, %c0_60], %210 {strides = array<i32>} : memref<64x64xf32, #tpu.memory_space<vmem>>, vector<8x64xf32>,
    %c6_i32 = arith.constant 6 : i32
    %c8_i32_61 = arith.constant 8 : i32
    %213 = arith.muli %c6_i32, %c8_i32_61 : i32
    %214 = tpu.assume_multiple %213, 8 : i32
    %c7_i32_62 = arith.constant 7 : i32
    %215 = arith.subi %c7_i32_62, %c6_i32 : i32
    %c8_i32_63 = arith.constant 8 : i32
    %216 = arith.muli %215, %c8_i32_63 : i32
    %217 = tpu.assume_multiple %216, 8 : i32
    %218 = arith.index_cast %214 : i32 to index
    %c0_64 = arith.constant 0 : index
    %219 = vector.load %arg10[%218, %c0_64] : memref<64x256xf32, #tpu.memory_space<vmem>>, vector<8x256xf32>
    %220 = arith.index_cast %217 : i32 to index
    %c0_65 = arith.constant 0 : index
    %221 = vector.load %arg10[%220, %c0_65] : memref<64x256xf32, #tpu.memory_space<vmem>>, vector<8x256xf32>
    %222 = arith.select %25, %219, %221 : vector<8x256xi1>, vector<8x256xf32>
    %cst_66 = arith.constant dense<0.000000e+00> : vector<8x256xf32>
    %223 = tpu.matmul %210, %31, %cst_66 {dimension_numbers = #tpu.dot_dimension_numbers<[1], [0], [0], [1], [0, 0, 1, 1], [], []>} : vector<8x64xf32>, vector<64x256xf32>, vector<8x256xf32> -> vector<8x256xf32>
    %224 = arith.addf %222, %223 : vector<8x256xf32>
    %225 = math.tanh %224 : vector<8x256xf32>
    %226 = arith.negf %224 : vector<8x256xf32>
    %227 = math.exp %226 : vector<8x256xf32>
    %cst_67 = arith.constant 1.000000e+00 : f32
    %228 = vector.broadcast %cst_67 : f32 to vector<8x256xf32>
    %229 = arith.addf %228, %227 : vector<8x256xf32>
    %230 = arith.divf %228, %229 : vector<8x256xf32>
    %231 = arith.select %30, %225, %230 : vector<8x256xi1>, vector<8x256xf32>
    %232 = vector.extract_strided_slice %231 {offsets = [0, 0], sizes = [8, 64], strides = [1, 1]} : vector<8x256xf32> to vector<8x64xf32>
    %233 = vector.extract_strided_slice %231 {offsets = [0, 64], sizes = [8, 64], strides = [1, 1]} : vector<8x256xf32> to vector<8x64xf32>
    %234 = vector.extract_strided_slice %231 {offsets = [0, 128], sizes = [8, 64], strides = [1, 1]} : vector<8x256xf32> to vector<8x64xf32>
    %235 = vector.extract_strided_slice %231 {offsets = [0, 192], sizes = [8, 64], strides = [1, 1]} : vector<8x256xf32> to vector<8x64xf32>
    %236 = arith.mulf %233, %208 : vector<8x64xf32>
    %237 = arith.mulf %232, %234 : vector<8x64xf32>
    %238 = arith.addf %236, %237 : vector<8x64xf32>
    %239 = math.tanh %238 : vector<8x64xf32>
    %240 = arith.mulf %235, %239 : vector<8x64xf32>
    %241 = arith.index_cast %214 : i32 to index
    %c0_68 = arith.constant 0 : index
    %242 = vector.load %arg11[%241, %c0_68] : memref<64x64xf32, #tpu.memory_space<vmem>>, vector<8x64xf32>
    tpu.vector_store %arg11[%241, %c0_68], %240 {strides = array<i32>} : memref<64x64xf32, #tpu.memory_space<vmem>>, vector<8x64xf32>,
    %c7_i32_69 = arith.constant 7 : i32
    %c8_i32_70 = arith.constant 8 : i32
    %243 = arith.muli %c7_i32_69, %c8_i32_70 : i32
    %244 = tpu.assume_multiple %243, 8 : i32
    %c7_i32_71 = arith.constant 7 : i32
    %245 = arith.subi %c7_i32_71, %c7_i32_69 : i32
    %c8_i32_72 = arith.constant 8 : i32
    %246 = arith.muli %245, %c8_i32_72 : i32
    %247 = tpu.assume_multiple %246, 8 : i32
    %248 = arith.index_cast %244 : i32 to index
    %c0_73 = arith.constant 0 : index
    %249 = vector.load %arg10[%248, %c0_73] : memref<64x256xf32, #tpu.memory_space<vmem>>, vector<8x256xf32>
    %250 = arith.index_cast %247 : i32 to index
    %c0_74 = arith.constant 0 : index
    %251 = vector.load %arg10[%250, %c0_74] : memref<64x256xf32, #tpu.memory_space<vmem>>, vector<8x256xf32>
    %252 = arith.select %25, %249, %251 : vector<8x256xi1>, vector<8x256xf32>
    %cst_75 = arith.constant dense<0.000000e+00> : vector<8x256xf32>
    %253 = tpu.matmul %240, %31, %cst_75 {dimension_numbers = #tpu.dot_dimension_numbers<[1], [0], [0], [1], [0, 0, 1, 1], [], []>} : vector<8x64xf32>, vector<64x256xf32>, vector<8x256xf32> -> vector<8x256xf32>
    %254 = arith.addf %252, %253 : vector<8x256xf32>
    %255 = math.tanh %254 : vector<8x256xf32>
    %256 = arith.negf %254 : vector<8x256xf32>
    %257 = math.exp %256 : vector<8x256xf32>
    %cst_76 = arith.constant 1.000000e+00 : f32
    %258 = vector.broadcast %cst_76 : f32 to vector<8x256xf32>
    %259 = arith.addf %258, %257 : vector<8x256xf32>
    %260 = arith.divf %258, %259 : vector<8x256xf32>
    %261 = arith.select %30, %255, %260 : vector<8x256xi1>, vector<8x256xf32>
    %262 = vector.extract_strided_slice %261 {offsets = [0, 0], sizes = [8, 64], strides = [1, 1]} : vector<8x256xf32> to vector<8x64xf32>
    %263 = vector.extract_strided_slice %261 {offsets = [0, 64], sizes = [8, 64], strides = [1, 1]} : vector<8x256xf32> to vector<8x64xf32>
    %264 = vector.extract_strided_slice %261 {offsets = [0, 128], sizes = [8, 64], strides = [1, 1]} : vector<8x256xf32> to vector<8x64xf32>
    %265 = vector.extract_strided_slice %261 {offsets = [0, 192], sizes = [8, 64], strides = [1, 1]} : vector<8x256xf32> to vector<8x64xf32>
    %266 = arith.mulf %263, %238 : vector<8x64xf32>
    %267 = arith.mulf %262, %264 : vector<8x64xf32>
    %268 = arith.addf %266, %267 : vector<8x64xf32>
    %269 = math.tanh %268 : vector<8x64xf32>
    %270 = arith.mulf %265, %269 : vector<8x64xf32>
    %271 = arith.index_cast %244 : i32 to index
    %c0_77 = arith.constant 0 : index
    %272 = vector.load %arg11[%271, %c0_77] : memref<64x64xf32, #tpu.memory_space<vmem>>, vector<8x64xf32>
    tpu.vector_store %arg11[%271, %c0_77], %270 {strides = array<i32>} : memref<64x64xf32, #tpu.memory_space<vmem>>, vector<8x64xf32>,
    %c8_i32_78 = arith.constant 8 : i32
    %c0_79 = arith.constant 0 : index
    %c0_80 = arith.constant 0 : index
    %273 = vector.load %arg11[%c0_79, %c0_80] : memref<64x64xf32, #tpu.memory_space<vmem>>, vector<64x64xf32>
    %c0_81 = arith.constant 0 : index
    %c0_82 = arith.constant 0 : index
    %274 = vector.load %arg7[%c0_81, %c0_82] : memref<64x64xf32, #tpu.memory_space<vmem>>, vector<64x64xf32>
    %275 = vector.extract_strided_slice %273 {offsets = [0, 0], sizes = [64, 32], strides = [1, 1]} : vector<64x64xf32> to vector<64x32xf32>
    %cst_83 = arith.constant dense<0.000000e+00> : vector<64x32xf32>
    %276 = tpu.matmul %274, %275, %cst_83 {dimension_numbers = #tpu.dot_dimension_numbers<[1], [0], [0], [1], [0, 0, 1, 1], [], []>} : vector<64x64xf32>, vector<64x32xf32>, vector<64x32xf32> -> vector<64x32xf32>
    %c0_84 = arith.constant 0 : index
    %c0_85 = arith.constant 0 : index
    %277 = vector.load %arg8[%c0_84, %c0_85] : memref<64x64xf32, #tpu.memory_space<vmem>>, vector<64x64xf32>
    %278 = vector.extract_strided_slice %273 {offsets = [0, 32], sizes = [64, 32], strides = [1, 1]} : vector<64x64xf32> to vector<64x32xf32>
    %cst_86 = arith.constant dense<0.000000e+00> : vector<64x32xf32>
    %279 = tpu.matmul %277, %278, %cst_86 {dimension_numbers = #tpu.dot_dimension_numbers<[1], [0], [0], [1], [0, 0, 1, 1], [], []>} : vector<64x64xf32>, vector<64x32xf32>, vector<64x32xf32> -> vector<64x32xf32>
    %c0_87 = arith.constant 0 : index
    %c0_88 = arith.constant 0 : index
    %280 = vector.load %arg4[%c0_87, %c0_88] : memref<32x128xf32, #tpu.memory_space<vmem>>, vector<32x128xf32>
    %cst_89 = arith.constant dense<0.000000e+00> : vector<64x128xf32>
    %281 = tpu.matmul %276, %280, %cst_89 {dimension_numbers = #tpu.dot_dimension_numbers<[1], [0], [0], [1], [0, 0, 1, 1], [], []>} : vector<64x32xf32>, vector<32x128xf32>, vector<64x128xf32> -> vector<64x128xf32>
    %c0_90 = arith.constant 0 : index
    %c0_91 = arith.constant 0 : index
    %282 = vector.load %arg5[%c0_90, %c0_91] : memref<32x128xf32, #tpu.memory_space<vmem>>, vector<32x128xf32>
    %cst_92 = arith.constant dense<0.000000e+00> : vector<64x128xf32>
    %283 = tpu.matmul %279, %282, %cst_92 {dimension_numbers = #tpu.dot_dimension_numbers<[1], [0], [0], [1], [0, 0, 1, 1], [], []>} : vector<64x32xf32>, vector<32x128xf32>, vector<64x128xf32> -> vector<64x128xf32>
    %284 = arith.addf %281, %283 : vector<64x128xf32>
    %c0_93 = arith.constant 0 : index
    %c0_94 = arith.constant 0 : index
    %285 = vector.load %arg6[%c0_93, %c0_94] : memref<1x128xf32, #tpu.memory_space<vmem>>, vector<1x128xf32>
    %286 = vector.broadcast %285 : vector<1x128xf32> to vector<64x128xf32>
    %287 = arith.addf %284, %286 : vector<64x128xf32>
    %c0_95 = arith.constant 0 : index
    %c0_96 = arith.constant 0 : index
    %288 = vector.load %arg9[%c0_95, %c0_96] : memref<64x128xf32, #tpu.memory_space<vmem>>, vector<64x128xf32>
    tpu.vector_store %arg9[%c0_95, %c0_96], %287 {strides = array<i32>} : memref<64x128xf32, #tpu.memory_space<vmem>>, vector<64x128xf32>,
    return
  }
}

</mosaic_0001>

<llo_original>
// kernel: grulm_forward.1
$region0: #{grulm_forward.1}
  #allocation0 [shape = 'u32[]', space=smem, size = 0x4, offset = 0x4, fixed_abs, tag = 'smem constant byte address 0x4 - core index']
  #allocation1 [shape = 'u32[144,128]{1,0:T(1,128)}', space=vmem, size = 0x12000, scoped, tag = 'internal scratch']
  #allocation2 [shape = 'f32[64,256]{1,0:T(8,128)}', space=vmem, size = 0x10000, scoped, tag = 'scratch operand']
  #allocation3 [shape = 'f32[64,64]{1,0:T(8,128)}', space=vmem, size = 0x8000, scoped, tag = 'scratch operand']
  %s0 = inlined_call_operand.vmem [shape: f32[64,16], index: 0, kind: input, shape index: {}]
  %s1 = inlined_call_operand.vmem [shape: f32[16,256], index: 1, kind: input, shape index: {}]
  %s2 = inlined_call_operand.vmem [shape: f32[64,256], index: 2, kind: input, shape index: {}]
  %s3 = inlined_call_operand.vmem [shape: f32[1,256], index: 3, kind: input, shape index: {}]
  %s4 = inlined_call_operand.vmem [shape: f32[32,128], index: 4, kind: input, shape index: {}]
  %s5 = inlined_call_operand.vmem [shape: f32[32,128], index: 5, kind: input, shape index: {}]
  %s6 = inlined_call_operand.vmem [shape: f32[1,128], index: 6, kind: input, shape index: {}]
  %s7 = inlined_call_operand.vmem [shape: f32[64,64], index: 7, kind: input, shape index: {}]
  %s8 = inlined_call_operand.vmem [shape: f32[64,64], index: 8, kind: input, shape index: {}]
  %s9 = inlined_call_operand.hbm [shape: f32[64,128], index: 9, kind: output, shape index: {}]
  %s10 = sld [smem:[#allocation0]]
  $region46: #{grulm_forward.1} parent=0
    _
  %s12 = ssub.s32 1, %s10
  %s13 = scalar_select 0, %s12, %s10
  $region1: #{grulm_forward.1} parent=0
    #allocation4 [shape = 'u8[32768]{0}', space=vmem, size = 0x8000, scoped, tag = 'output window, operand 0, single buffered']
    #allocation5 [shape = 's32[1]{0}', space=sflag, size = 0x4, scoped, tag = 'scoped memory for grulm_forward.1']
    %14 = vsyncpa [#allocation5], 0
    // Predicated region
    $region2: #{grulm_forward.1} parent=1 // pred_check
      _
    $region3: #{grulm_forward.1} parent=1 // pred_check_branch
      %16 = sbr.rel (0) target = $region5
    $region4: #{grulm_forward.1} parent=1 // pred_region
      _
    $region5: #{grulm_forward.1} parent=1 // pred_fallthru
      _
    // Predicated region
    $region6: #{grulm_forward.1} parent=1 // pred_check
      _
    $region7: #{grulm_forward.1} parent=1 // pred_check_branch
      %18 = sbr.rel (0) target = $region9
    $region8: #{grulm_forward.1} parent=1 // pred_region
      _
    $region9: #{grulm_forward.1} parent=1 // pred_fallthru
      _
    // Predicated region
    $region10: #{grulm_forward.1} parent=1 // pred_check
      _
    $region11: #{grulm_forward.1} parent=1 // pred_check_branch
      %20 = sbr.rel (0) target = $region13
    $region12: #{grulm_forward.1} parent=1 // pred_region
      _
    $region13: #{grulm_forward.1} parent=1 // pred_fallthru
      _
    // Predicated region
    $region14: #{grulm_forward.1} parent=1 // pred_check
      _
    $region15: #{grulm_forward.1} parent=1 // pred_check_branch
      %22 = sbr.rel (0) target = $region17
    $region16: #{grulm_forward.1} parent=1 // pred_region
      _
    $region17: #{grulm_forward.1} parent=1 // pred_fallthru
      _
    // Predicated region
    $region18: #{grulm_forward.1} parent=1 // pred_check
      _
    $region19: #{grulm_forward.1} parent=1 // pred_check_branch
      %24 = sbr.rel (0) target = $region21
    $region20: #{grulm_forward.1} parent=1 // pred_region
      _
    $region21: #{grulm_forward.1} parent=1 // pred_fallthru
      _
    // Predicated region
    $region22: #{grulm_forward.1} parent=1 // pred_check
      _
    $region23: #{grulm_forward.1} parent=1 // pred_check_branch
      %26 = sbr.rel (0) target = $region25
    $region24: #{grulm_forward.1} parent=1 // pred_region
      _
    $region25: #{grulm_forward.1} parent=1 // pred_fallthru
      _
    // Predicated region
    $region26: #{grulm_forward.1} parent=1 // pred_check
      _
    $region27: #{grulm_forward.1} parent=1 // pred_check_branch
      %28 = sbr.rel (0) target = $region29
    $region28: #{grulm_forward.1} parent=1 // pred_region
      _
    $region29: #{grulm_forward.1} parent=1 // pred_fallthru
      _
    // Predicated region
    $region30: #{grulm_forward.1} parent=1 // pred_check
      _
    $region31: #{grulm_forward.1} parent=1 // pred_check_branch
      %30 = sbr.rel (0) target = $region33
    $region32: #{grulm_forward.1} parent=1 // pred_region
      _
    $region33: #{grulm_forward.1} parent=1 // pred_fallthru
      _
    // Predicated region
    $region34: #{grulm_forward.1} parent=1 // pred_check
      _
    $region35: #{grulm_forward.1} parent=1 // pred_check_branch
      %32 = sbr.rel (0) target = $region37
    $region36: #{grulm_forward.1} parent=1 // pred_region
      _
    $region37: #{grulm_forward.1} parent=1 // pred_fallthru
      _
    %v33 = vld [vmem:[%s0] sm:$0xff]
    %v34 = vld [vmem:[%s0 + $0x8] sm:$0xff]
    %v35 = vld [vmem:[%s0 + $0x10] sm:$0xff]
    %v36 = vld [vmem:[%s0 + $0x18] sm:$0xff]
    %v37 = vld [vmem:[%s0 + $0x20] sm:$0xff]
    %v38 = vld [vmem:[%s0 + $0x28] sm:$0xff]
    %v39 = vld [vmem:[%s0 + $0x30] sm:$0xff]
    %v40 = vld [vmem:[%s0 + $0x38] sm:$0xff]
    %v41 = vld [vmem:[%s1] sm:$0xff]
    %v42 = vld [vmem:[%s1 + $0x8] sm:$0xff]
    %v43 = vld [vmem:[%s1 + $0x10] sm:$0xff]
    %v44 = vld [vmem:[%s1 + $0x18] sm:$0xff]
    %v45 = vld [vmem:[%s3] sm:$0x3]
    %v47 = vlaneseq
    %v48 = vshrl.u32 %v47, 7
    %v49 = vsub.s32 0, %v48
    %v50 = vrot.slane %v45, %v49
    %v51 = vlaneseq
    %v52 = vshrl.u32 %v51, 7
    %v53 = vsub.s32 1, %v52
    %v54 = vrot.slane %v45, %v53
    %vm57 = vcmask 130048
    %v59 = vsel %vm57, %v33, 0
    %v62 = vsel %vm57, %v34, 0
    %v65 = vsel %vm57, %v35, 0
    %v68 = vsel %vm57, %v36, 0
    %v71 = vsel %vm57, %v37, 0
    %v74 = vsel %vm57, %v38, 0
    %v77 = vsel %vm57, %v39, 0
    %v80 = vsel %vm57, %v40, 0
    %82 = vmatprep.subr.mxu0 0.0
    %83 = vmatpush1.msra.mxu0 0.0
    %84 = vmatprep.subr.mxu0 0.0
    %85 = vmatpush1.msra.mxu0 0.0
    %86 = vmatprep.subr.mxu0 0.0
    %87 = vmatpush1.msra.mxu0 0.0
    %88 = vmatprep.subr.mxu0 0.0
    %89 = vmatpush1.msra.mxu0 0.0
    %90 = vmatprep.subr.mxu0 0.0
    %91 = vmatpush1.msra.mxu0 0.0
    %92 = vmatprep.subr.mxu0 0.0
    %93 = vmatpush1.msra.mxu0 0.0
    %94 = vmatprep.subr.mxu0 0.0
    %95 = vmatpush1.msra.mxu0 0.0
    %96 = vmatprep.subr.mxu0 0.0
    %97 = vmatpush1.msra.mxu0 0.0
    %98 = vmatprep.subr.mxu0 0.0
    %99 = vmatpush1.msra.mxu0 0.0
    %100 = vmatprep.subr.mxu0 0.0
    %101 = vmatpush1.msra.mxu0 0.0
    %102 = vmatprep.subr.mxu0 0.0
    %103 = vmatpush1.msra.mxu0 0.0
    %104 = vmatprep.subr.mxu0 0.0
    %105 = vmatpush1.msra.mxu0 0.0
    %106 = vmatprep.subr.mxu0 0.0
    %107 = vmatpush1.msra.mxu0 0.0
    %108 = vmatprep.subr.mxu0 0.0
    %109 = vmatpush1.msra.mxu0 0.0
    %110 = vmatprep.subr.mxu0 %v44
    %111 = vmatpush1.msra.mxu0 %v43
    %112 = vmatprep.subr.mxu0 %v42
    %113 = vmatpush1.msra.mxu0 %v41
    %114 = vmatprep.subr.mxu0 0.0
    %115 = vmatpush2.msra.mxu0 0.0
    %116 = vmatprep.subr.mxu0 0.0
    %117 = vmatpush2.msra.mxu0 0.0
    %118 = vmatprep.subr.mxu0 0.0
    %119 = vmatpush2.msra.mxu0 0.0
    %120 = vmatprep.subr.mxu0 0.0
    %121 = vmatpush2.msra.mxu0 0.0
    %122 = vmatprep.subr.mxu0 0.0
    %123 = vmatpush2.msra.mxu0 0.0
    %124 = vmatprep.subr.mxu0 0.0
    %125 = vmatpush2.msra.mxu0 0.0
    %126 = vmatprep.subr.mxu0 0.0
    %127 = vmatpush2.msra.mxu0 0.0
    %128 = vmatprep.subr.mxu0 0.0
    %129 = vmatpush2.msra.mxu0 0.0
    %130 = vmatprep.subr.mxu0 0.0
    %131 = vmatpush2.msra.mxu0 0.0
    %132 = vmatprep.subr.mxu0 0.0
    %133 = vmatpush2.msra.mxu0 0.0
    %134 = vmatprep.subr.mxu0 0.0
    %135 = vmatpush2.msra.mxu0 0.0
    %136 = vmatprep.subr.mxu0 0.0
    %137 = vmatpush2.msra.mxu0 0.0
    %138 = vmatprep.subr.mxu0 0.0
    %139 = vmatpush2.msra.mxu0 0.0
    %140 = vmatprep.subr.mxu0 0.0
    %141 = vmatpush2.msra.mxu0 0.0
    %142 = vmatprep.subr.mxu0 0.0
    %143 = vmatpush2.msra.mxu0 0.0
    %144 = vmatprep.subr.mxu0 0.0
    %145 = vmatpush2.msra.mxu0 0.0
    %146 = vmatprep.mubr.f32.mxu0 0.0
    %147 = vmatmul.mubr.f32.gmra.mxu0 %v59
    %v148 = vpop.f32.mrf.mxu0
    %v149 = vadd.f32 %v50, %v148
    %v150 = vpop.f32.mrf.mxu0
    %v151 = vadd.f32 %v54, %v150
    %152 = vmatprep.mubr.f32.mxu0 0.0
    %153 = vmatmul.mubr.f32.gmra.mxu0 %v62
    %v154 = vpop.f32.mrf.mxu0
    %v155 = vadd.f32 %v50, %v154
    %v156 = vpop.f32.mrf.mxu0
    %v157 = vadd.f32 %v54, %v156
    %158 = vmatprep.mubr.f32.mxu0 0.0
    %159 = vmatmul.mubr.f32.gmra.mxu0 %v65
    %v160 = vpop.f32.mrf.mxu0
    %v161 = vadd.f32 %v50, %v160
    %v162 = vpop.f32.mrf.mxu0
    %v163 = vadd.f32 %v54, %v162
    %164 = vmatprep.mubr.f32.mxu0 0.0
    %165 = vmatmul.mubr.f32.gmra.mxu0 %v68
    %v166 = vpop.f32.mrf.mxu0
    %v167 = vadd.f32 %v50, %v166
    %v168 = vpop.f32.mrf.mxu0
    %v169 = vadd.f32 %v54, %v168
    %170 = vmatprep.mubr.f32.mxu0 0.0
    %171 = vmatmul.mubr.f32.gmra.mxu0 %v71
    %v172 = vpop.f32.mrf.mxu0
    %v173 = vadd.f32 %v50, %v172
    %v174 = vpop.f32.mrf.mxu0
    %v175 = vadd.f32 %v54, %v174
    %176 = vmatprep.mubr.f32.mxu0 0.0
    %177 = vmatmul.mubr.f32.gmra.mxu0 %v74
    %v178 = vpop.f32.mrf.mxu0
    %v179 = vadd.f32 %v50, %v178
    %v180 = vpop.f32.mrf.mxu0
    %v181 = vadd.f32 %v54, %v180
    %182 = vmatprep.mubr.f32.mxu0 0.0
    %183 = vmatmul.mubr.f32.gmra.mxu0 %v77
    %v184 = vpop.f32.mrf.mxu0
    %v185 = vadd.f32 %v50, %v184
    %v186 = vpop.f32.mrf.mxu0
    %v187 = vadd.f32 %v54, %v186
    %188 = vmatprep.mubr.f32.mxu0 0.0
    %189 = vmatmul.mubr.f32.gmra.mxu0 %v80
    %v190 = vpop.f32.mrf.mxu0
    %v191 = vadd.f32 %v50, %v190
    %v192 = vpop.f32.mrf.mxu0
    %v193 = vadd.f32 %v54, %v192
    %194 = vdwg.mxu0
    %195 = vst [vmem:[#allocation2] sm:$0xff] %v149
    %196 = vst [vmem:[#allocation2 + $0x8] sm:$0xff] %v151
    %197 = vst [vmem:[#allocation2 + $0x10] sm:$0xff] %v155
    %198 = vst [vmem:[#allocation2 + $0x18] sm:$0xff] %v157
    %199 = vst [vmem:[#allocation2 + $0x20] sm:$0xff] %v161
    %200 = vst [vmem:[#allocation2 + $0x28] sm:$0xff] %v163
    %201 = vst [vmem:[#allocation2 + $0x30] sm:$0xff] %v167
    %202 = vst [vmem:[#allocation2 + $0x38] sm:$0xff] %v169
    %203 = vst [vmem:[#allocation2 + $0x40] sm:$0xff] %v173
    %204 = vst [vmem:[#allocation2 + $0x48] sm:$0xff] %v175
    %205 = vst [vmem:[#allocation2 + $0x50] sm:$0xff] %v179
    %206 = vst [vmem:[#allocation2 + $0x58] sm:$0xff] %v181
    %207 = vst [vmem:[#allocation2 + $0x60] sm:$0xff] %v185
    %208 = vst [vmem:[#allocation2 + $0x68] sm:$0xff] %v187
    %209 = vst [vmem:[#allocation2 + $0x70] sm:$0xff] %v191
    %210 = vst [vmem:[#allocation2 + $0x78] sm:$0xff] %v193
    %v211 = vlaneseq
    %v212 = vand.u32 %v211, 127
    %v213 = vadd.s32 %v212, 128
    %vm214 = vcmp.lt.s32.totalorder %v212, 0
    %v215 = vsub.s32 0, %v212
    %v216 = vsel %vm214, %v215, %v212
    %v217 = vshrl.u32 %v216, 6
    %v218 = vand.u32 %v216, 63
    %v219 = vsub.s32 0, %v218
    %v220 = vsel %vm214, %v219, %v218
    %vm221 = vcmp.lt.s32.totalorder %v213, 0
    %v222 = vsub.s32 0, %v213
    %v223 = vsel %vm221, %v222, %v213
    %v224 = vshrl.u32 %v223, 6
    %v225 = vand.u32 %v223, 63
    %v226 = vsub.s32 0, %v225
    %v227 = vsel %vm221, %v226, %v225
    %vm228 = vcmp.ne.s32.totalorder %v220, 0
    %vm229 = vcmp.ne.s32.totalorder %v227, 0
    %vm230 = vcmp.lt.s32.totalorder %v220, 0
    %vm231 = vcmp.lt.s32.totalorder %v227, 0
    %vm232 = vmand %vm230, %vm228
    %vm233 = vmand %vm231, %vm229
    %v234 = vadd.s32 %v220, 64
    %v235 = vadd.s32 %v227, 64
    %v236 = vsel %vm232, %v234, %v220
    %v237 = vsel %vm233, %v235, %v227
    %vm238 = vcmp.lt.s32.totalorder %v236, 32
    %vm239 = vcmp.lt.s32.totalorder %v237, 32
    %vm240 = vcmp.ge.s32.totalorder %v212, 128
    %vm241 = vcmp.ge.s32.totalorder %v213, 128
    %vm242 = vcmp.lt.s32.totalorder %v212, 192
    %vm243 = vcmp.lt.s32.totalorder %v213, 192
    %vm244 = vmand %vm240, %vm242
    %vm245 = vmand %vm241, %vm243
    %v246 = vld [vmem:[%s2] sm:$0xff]
    %v247 = vld [vmem:[%s2 + $0x8] sm:$0xff]
    %v248 = vld [vmem:[%s2 + $0x10] sm:$0xff]
    %v249 = vld [vmem:[%s2 + $0x18] sm:$0xff]
    %v250 = vld [vmem:[%s2 + $0x20] sm:$0xff]
    %v251 = vld [vmem:[%s2 + $0x28] sm:$0xff]
    %v252 = vld [vmem:[%s2 + $0x30] sm:$0xff]
    %v253 = vld [vmem:[%s2 + $0x38] sm:$0xff]
    %v254 = vld [vmem:[%s2 + $0x40] sm:$0xff]
    %v255 = vld [vmem:[%s2 + $0x48] sm:$0xff]
    %v256 = vld [vmem:[%s2 + $0x50] sm:$0xff]
    %v257 = vld [vmem:[%s2 + $0x58] sm:$0xff]
    %v258 = vld [vmem:[%s2 + $0x60] sm:$0xff]
    %v259 = vld [vmem:[%s2 + $0x68] sm:$0xff]
    %v260 = vld [vmem:[%s2 + $0x70] sm:$0xff]
    %v261 = vld [vmem:[%s2 + $0x78] sm:$0xff]
    %s262 = smul.u32 0, 2
    %s263 = smul.addr %s262, 8
    %s264 = scalar_lea.vmem [#allocation2], %s263
    %v265 = vld [vmem:[%s264] sm:$0xff]
    %v266 = vld [vmem:[%s264 + $0x8] sm:$0xff]
    %s267 = smul.u32 7, 2
    %s268 = smul.addr %s267, 8
    %s269 = scalar_lea.vmem [#allocation2], %s268
    %v270 = vld [vmem:[%s269] sm:$0xff]
    %v271 = vld [vmem:[%s269 + $0x8] sm:$0xff]
    %v272 = vsel %vm238, %v265, %v270
    %v273 = vsel %vm239, %v266, %v271
    %vm274 = vcmask 523264
    %v276 = vsel %vm274, 0.0, 0
    %278 = vmatprep.subr.mxu0 0.0
    %279 = vmatpush1.msra.mxu0 0.0
    %280 = vmatprep.subr.mxu0 0.0
    %281 = vmatpush1.msra.mxu0 0.0
    %282 = vmatprep.subr.mxu0 0.0
    %283 = vmatpush1.msra.mxu0 0.0
    %284 = vmatprep.subr.mxu0 0.0
    %285 = vmatpush1.msra.mxu0 0.0
    %286 = vmatprep.subr.mxu0 0.0
    %287 = vmatpush1.msra.mxu0 0.0
    %288 = vmatprep.subr.mxu0 0.0
    %289 = vmatpush1.msra.mxu0 0.0
    %290 = vmatprep.subr.mxu0 0.0
    %291 = vmatpush1.msra.mxu0 0.0
    %292 = vmatprep.subr.mxu0 0.0
    %293 = vmatpush1.msra.mxu0 0.0
    %294 = vmatprep.subr.mxu0 %v261
    %295 = vmatpush1.msra.mxu0 %v260
    %296 = vmatprep.subr.mxu0 %v259
    %297 = vmatpush1.msra.mxu0 %v258
    %298 = vmatprep.subr.mxu0 %v257
    %299 = vmatpush1.msra.mxu0 %v256
    %300 = vmatprep.subr.mxu0 %v255
    %301 = vmatpush1.msra.mxu0 %v254
    %302 = vmatprep.subr.mxu0 %v253
    %303 = vmatpush1.msra.mxu0 %v252
    %304 = vmatprep.subr.mxu0 %v251
    %305 = vmatpush1.msra.mxu0 %v250
    %306 = vmatprep.subr.mxu0 %v249
    %307 = vmatpush1.msra.mxu0 %v248
    %308 = vmatprep.subr.mxu0 %v247
    %309 = vmatpush1.msra.mxu0 %v246
    %310 = vmatprep.subr.mxu0 0.0
    %311 = vmatpush2.msra.mxu0 0.0
    %312 = vmatprep.subr.mxu0 0.0
    %313 = vmatpush2.msra.mxu0 0.0
    %314 = vmatprep.subr.mxu0 0.0
    %315 = vmatpush2.msra.mxu0 0.0
    %316 = vmatprep.subr.mxu0 0.0
    %317 = vmatpush2.msra.mxu0 0.0
    %318 = vmatprep.subr.mxu0 0.0
    %319 = vmatpush2.msra.mxu0 0.0
    %320 = vmatprep.subr.mxu0 0.0
    %321 = vmatpush2.msra.mxu0 0.0
    %322 = vmatprep.subr.mxu0 0.0
    %323 = vmatpush2.msra.mxu0 0.0
    %324 = vmatprep.subr.mxu0 0.0
    %325 = vmatpush2.msra.mxu0 0.0
    %326 = vmatprep.subr.mxu0 0.0
    %327 = vmatpush2.msra.mxu0 0.0
    %328 = vmatprep.subr.mxu0 0.0
    %329 = vmatpush2.msra.mxu0 0.0
    %330 = vmatprep.subr.mxu0 0.0
    %331 = vmatpush2.msra.mxu0 0.0
    %332 = vmatprep.subr.mxu0 0.0
    %333 = vmatpush2.msra.mxu0 0.0
    %334 = vmatprep.subr.mxu0 0.0
    %335 = vmatpush2.msra.mxu0 0.0
    %336 = vmatprep.subr.mxu0 0.0
    %337 = vmatpush2.msra.mxu0 0.0
    %338 = vmatprep.subr.mxu0 0.0
    %339 = vmatpush2.msra.mxu0 0.0
    %340 = vmatprep.subr.mxu0 0.0
    %341 = vmatpush2.msra.mxu0 0.0
    %342 = vmatprep.mubr.f32.mxu0 0.0
    %343 = vmatmul.mubr.f32.gmra.mxu0 %v276
    %v344 = vpop.f32.mrf.mxu0
    %v345 = vadd.f32 0.0, %v344
    %v346 = vpop.f32.mrf.mxu0
    %v347 = vadd.f32 0.0, %v346
    %348 = vdwg.mxu0
    %v349 = vadd.f32 %v272, %v345
    %v350 = vadd.f32 %v273, %v347
    %v351 = vtanh.pop %v349
    %v352 = vtanh.pop %v350
    %v353 = vxor.u32 %v349, 2147483648
    %v354 = vxor.u32 %v350, 2147483648
    %v355 = vmul.f32 %v353, 1.442695
    %v356 = vpow.pop %v355
    %v357 = vmul.f32 %v354, 1.442695
    %v358 = vpow.pop %v357
    %v359 = vadd.f32 %v356, 1.0
    %v360 = vadd.f32 %v358, 1.0
    %v361 = vrcp.pop %v359
    %v362 = vmul.f32 1.0, %v361
    %v363 = vrcp.pop %v360
    %v364 = vmul.f32 1.0, %v363
    %v365 = vsel %vm244, %v351, %v362
    %v366 = vsel %vm245, %v352, %v364
    %v367 = vmul.f32 %v365, 0.0
    %v368 = vmul.f32 %v365, %v366
    %370 = vrot.lane.b32.xlu0 %v368, 64
    %v371 = vpop.permute.xlu0 %370
    %v373 = vadd.f32 %v367, %v371
    %v374 = vtanh.pop %v373
    %v375 = vmul.f32 %v366, %v374
    %377 = vrot.lane.b32.xlu0 %v375, 64
    %v378 = vpop.permute.xlu0 %377
    %380 = vst.msk [vmem:[#allocation3] sm:$0xff] %vm274, %v378
    %s381 = smul.u32 1, 2
    %s382 = smul.addr %s381, 8
    %s383 = scalar_lea.vmem [#allocation2], %s382
    %v384 = vld [vmem:[%s383] sm:$0xff]
    %v385 = vld [vmem:[%s383 + $0x8] sm:$0xff]
    %s386 = smul.u32 6, 2
    %s387 = smul.addr %s386, 8
    %s388 = scalar_lea.vmem [#allocation2], %s387
    %v389 = vld [vmem:[%s388] sm:$0xff]
    %v390 = vld [vmem:[%s388 + $0x8] sm:$0xff]
    %v391 = vsel %vm238, %v384, %v389
    %v392 = vsel %vm239, %v385, %v390
    %v393 = vsel %vm274, %v378, 0
    %395 = vmatprep.subr.mxu0 0.0
    %396 = vmatpush1.msra.mxu0 0.0
    %397 = vmatprep.subr.mxu0 0.0
    %398 = vmatpush1.msra.mxu0 0.0
    %399 = vmatprep.subr.mxu0 0.0
    %400 = vmatpush1.msra.mxu0 0.0
    %401 = vmatprep.subr.mxu0 0.0
    %402 = vmatpush1.msra.mxu0 0.0
    %403 = vmatprep.subr.mxu0 0.0
    %404 = vmatpush1.msra.mxu0 0.0
    %405 = vmatprep.subr.mxu0 0.0
    %406 = vmatpush1.msra.mxu0 0.0
    %407 = vmatprep.subr.mxu0 0.0
    %408 = vmatpush1.msra.mxu0 0.0
    %409 = vmatprep.subr.mxu0 0.0
    %410 = vmatpush1.msra.mxu0 0.0
    %411 = vmatprep.subr.mxu0 %v261
    %412 = vmatpush1.msra.mxu0 %v260
    %413 = vmatprep.subr.mxu0 %v259
    %414 = vmatpush1.msra.mxu0 %v258
    %415 = vmatprep.subr.mxu0 %v257
    %416 = vmatpush1.msra.mxu0 %v256
    %417 = vmatprep.subr.mxu0 %v255
    %418 = vmatpush1.msra.mxu0 %v254
    %419 = vmatprep.subr.mxu0 %v253
    %420 = vmatpush1.msra.mxu0 %v252
    %421 = vmatprep.subr.mxu0 %v251
    %422 = vmatpush1.msra.mxu0 %v250
    %423 = vmatprep.subr.mxu0 %v249
    %424 = vmatpush1.msra.mxu0 %v248
    %425 = vmatprep.subr.mxu0 %v247
    %426 = vmatpush1.msra.mxu0 %v246
    %427 = vmatprep.subr.mxu0 0.0
    %428 = vmatpush2.msra.mxu0 0.0
    %429 = vmatprep.subr.mxu0 0.0
    %430 = vmatpush2.msra.mxu0 0.0
    %431 = vmatprep.subr.mxu0 0.0
    %432 = vmatpush2.msra.mxu0 0.0
    %433 = vmatprep.subr.mxu0 0.0
    %434 = vmatpush2.msra.mxu0 0.0
    %435 = vmatprep.subr.mxu0 0.0
    %436 = vmatpush2.msra.mxu0 0.0
    %437 = vmatprep.subr.mxu0 0.0
    %438 = vmatpush2.msra.mxu0 0.0
    %439 = vmatprep.subr.mxu0 0.0
    %440 = vmatpush2.msra.mxu0 0.0
    %441 = vmatprep.subr.mxu0 0.0
    %442 = vmatpush2.msra.mxu0 0.0
    %443 = vmatprep.subr.mxu0 0.0
    %444 = vmatpush2.msra.mxu0 0.0
    %445 = vmatprep.subr.mxu0 0.0
    %446 = vmatpush2.msra.mxu0 0.0
    %447 = vmatprep.subr.mxu0 0.0
    %448 = vmatpush2.msra.mxu0 0.0
    %449 = vmatprep.subr.mxu0 0.0
    %450 = vmatpush2.msra.mxu0 0.0
    %451 = vmatprep.subr.mxu0 0.0
    %452 = vmatpush2.msra.mxu0 0.0
    %453 = vmatprep.subr.mxu0 0.0
    %454 = vmatpush2.msra.mxu0 0.0
    %455 = vmatprep.subr.mxu0 0.0
    %456 = vmatpush2.msra.mxu0 0.0
    %457 = vmatprep.subr.mxu0 0.0
    %458 = vmatpush2.msra.mxu0 0.0
    %459 = vmatprep.mubr.f32.mxu0 0.0
    %460 = vmatmul.mubr.f32.gmra.mxu0 %v393
    %v461 = vpop.f32.mrf.mxu0
    %v462 = vadd.f32 0.0, %v461
    %v463 = vpop.f32.mrf.mxu0
    %v464 = vadd.f32 0.0, %v463
    %465 = vdwg.mxu0
    %v466 = vadd.f32 %v391, %v462
    %v467 = vadd.f32 %v392, %v464
    %v468 = vtanh.pop %v466
    %v469 = vtanh.pop %v467
    %v470 = vxor.u32 %v466, 2147483648
    %v471 = vxor.u32 %v467, 2147483648
    %v472 = vmul.f32 %v470, 1.442695
    %v473 = vpow.pop %v472
    %v474 = vmul.f32 %v471, 1.442695
    %v475 = vpow.pop %v474
    %v476 = vadd.f32 %v473, 1.0
    %v477 = vadd.f32 %v475, 1.0
    %v478 = vrcp.pop %v476
    %v479 = vmul.f32 1.0, %v478
    %v480 = vrcp.pop %v477
    %v481 = vmul.f32 1.0, %v480
    %v482 = vsel %vm244, %v468, %v479
    %v483 = vsel %vm245, %v469, %v481
    %v484 = vmul.f32 %v482, %v373
    %v485 = vmul.f32 %v482, %v483
    %487 = vrot.lane.b32.xlu0 %v485, 64
    %v488 = vpop.permute.xlu0 %487
    %v490 = vadd.f32 %v484, %v488
    %v491 = vtanh.pop %v490
    %v492 = vmul.f32 %v483, %v491
    %494 = vrot.lane.b32.xlu0 %v492, 64
    %v495 = vpop.permute.xlu0 %494
    %s497 = scalar_lea.vmem [#allocation3], 8
    %498 = vst.msk [vmem:[%s497] sm:$0xff] %vm274, %v495
    %s499 = smul.u32 2, 2
    %s500 = smul.addr %s499, 8
    %s501 = scalar_lea.vmem [#allocation2], %s500
    %v502 = vld [vmem:[%s501] sm:$0xff]
    %v503 = vld [vmem:[%s501 + $0x8] sm:$0xff]
    %s504 = smul.u32 5, 2
    %s505 = smul.addr %s504, 8
    %s506 = scalar_lea.vmem [#allocation2], %s505
    %v507 = vld [vmem:[%s506] sm:$0xff]
    %v508 = vld [vmem:[%s506 + $0x8] sm:$0xff]
    %v509 = vsel %vm238, %v502, %v507
    %v510 = vsel %vm239, %v503, %v508
    %v511 = vsel %vm274, %v495, 0
    %513 = vmatprep.subr.mxu0 0.0
    %514 = vmatpush1.msra.mxu0 0.0
    %515 = vmatprep.subr.mxu0 0.0
    %516 = vmatpush1.msra.mxu0 0.0
    %517 = vmatprep.subr.mxu0 0.0
    %518 = vmatpush1.msra.mxu0 0.0
    %519 = vmatprep.subr.mxu0 0.0
    %520 = vmatpush1.msra.mxu0 0.0
    %521 = vmatprep.subr.mxu0 0.0
    %522 = vmatpush1.msra.mxu0 0.0
    %523 = vmatprep.subr.mxu0 0.0
    %524 = vmatpush1.msra.mxu0 0.0
    %525 = vmatprep.subr.mxu0 0.0
    %526 = vmatpush1.msra.mxu0 0.0
    %527 = vmatprep.subr.mxu0 0.0
    %528 = vmatpush1.msra.mxu0 0.0
    %529 = vmatprep.subr.mxu0 %v261
    %530 = vmatpush1.msra.mxu0 %v260
    %531 = vmatprep.subr.mxu0 %v259
    %532 = vmatpush1.msra.mxu0 %v258
    %533 = vmatprep.subr.mxu0 %v257
    %534 = vmatpush1.msra.mxu0 %v256
    %535 = vmatprep.subr.mxu0 %v255
    %536 = vmatpush1.msra.mxu0 %v254
    %537 = vmatprep.subr.mxu0 %v253
    %538 = vmatpush1.msra.mxu0 %v252
    %539 = vmatprep.subr.mxu0 %v251
    %540 = vmatpush1.msra.mxu0 %v250
    %541 = vmatprep.subr.mxu0 %v249
    %542 = vmatpush1.msra.mxu0 %v248
    %543 = vmatprep.subr.mxu0 %v247
    %544 = vmatpush1.msra.mxu0 %v246
    %545 = vmatprep.subr.mxu0 0.0
    %546 = vmatpush2.msra.mxu0 0.0
    %547 = vmatprep.subr.mxu0 0.0
    %548 = vmatpush2.msra.mxu0 0.0
    %549 = vmatprep.subr.mxu0 0.0
    %550 = vmatpush2.msra.mxu0 0.0
    %551 = vmatprep.subr.mxu0 0.0
    %552 = vmatpush2.msra.mxu0 0.0
    %553 = vmatprep.subr.mxu0 0.0
    %554 = vmatpush2.msra.mxu0 0.0
    %555 = vmatprep.subr.mxu0 0.0
    %556 = vmatpush2.msra.mxu0 0.0
    %557 = vmatprep.subr.mxu0 0.0
    %558 = vmatpush2.msra.mxu0 0.0
    %559 = vmatprep.subr.mxu0 0.0
    %560 = vmatpush2.msra.mxu0 0.0
    %561 = vmatprep.subr.mxu0 0.0
    %562 = vmatpush2.msra.mxu0 0.0
    %563 = vmatprep.subr.mxu0 0.0
    %564 = vmatpush2.msra.mxu0 0.0
    %565 = vmatprep.subr.mxu0 0.0
    %566 = vmatpush2.msra.mxu0 0.0
    %567 = vmatprep.subr.mxu0 0.0
    %568 = vmatpush2.msra.mxu0 0.0
    %569 = vmatprep.subr.mxu0 0.0
    %570 = vmatpush2.msra.mxu0 0.0
    %571 = vmatprep.subr.mxu0 0.0
    %572 = vmatpush2.msra.mxu0 0.0
    %573 = vmatprep.subr.mxu0 0.0
    %574 = vmatpush2.msra.mxu0 0.0
    %575 = vmatprep.subr.mxu0 0.0
    %576 = vmatpush2.msra.mxu0 0.0
    %577 = vmatprep.mubr.f32.mxu0 0.0
    %578 = vmatmul.mubr.f32.gmra.mxu0 %v511
    %v579 = vpop.f32.mrf.mxu0
    %v580 = vadd.f32 0.0, %v579
    %v581 = vpop.f32.mrf.mxu0
    %v582 = vadd.f32 0.0, %v581
    %583 = vdwg.mxu0
    %v584 = vadd.f32 %v509, %v580
    %v585 = vadd.f32 %v510, %v582
    %v586 = vtanh.pop %v584
    %v587 = vtanh.pop %v585
    %v588 = vxor.u32 %v584, 2147483648
    %v589 = vxor.u32 %v585, 2147483648
    %v590 = vmul.f32 %v588, 1.442695
    %v591 = vpow.pop %v590
    %v592 = vmul.f32 %v589, 1.442695
    %v593 = vpow.pop %v592
    %v594 = vadd.f32 %v591, 1.0
    %v595 = vadd.f32 %v593, 1.0
    %v596 = vrcp.pop %v594
    %v597 = vmul.f32 1.0, %v596
    %v598 = vrcp.pop %v595
    %v599 = vmul.f32 1.0, %v598
    %v600 = vsel %vm244, %v586, %v597
    %v601 = vsel %vm245, %v587, %v599
    %v602 = vmul.f32 %v600, %v490
    %v603 = vmul.f32 %v600, %v601
    %605 = vrot.lane.b32.xlu0 %v603, 64
    %v606 = vpop.permute.xlu0 %605
    %v608 = vadd.f32 %v602, %v606
    %v609 = vtanh.pop %v608
    %v610 = vmul.f32 %v601, %v609
    %612 = vrot.lane.b32.xlu0 %v610, 64
    %v613 = vpop.permute.xlu0 %612
    %s615 = scalar_lea.vmem [#allocation3], 16
    %616 = vst.msk [vmem:[%s615] sm:$0xff] %vm274, %v613
    %s617 = smul.u32 3, 2
    %s618 = smul.addr %s617, 8
    %s619 = scalar_lea.vmem [#allocation2], %s618
    %v620 = vld [vmem:[%s619] sm:$0xff]
    %v621 = vld [vmem:[%s619 + $0x8] sm:$0xff]
    %s622 = smul.u32 4, 2
    %s623 = smul.addr %s622, 8
    %s624 = scalar_lea.vmem [#allocation2], %s623
    %v625 = vld [vmem:[%s624] sm:$0xff]
    %v626 = vld [vmem:[%s624 + $0x8] sm:$0xff]
    %v627 = vsel %vm238, %v620, %v625
    %v628 = vsel %vm239, %v621, %v626
    %v629 = vsel %vm274, %v613, 0
    %631 = vmatprep.subr.mxu0 0.0
    %632 = vmatpush1.msra.mxu0 0.0
    %633 = vmatprep.subr.mxu0 0.0
    %634 = vmatpush1.msra.mxu0 0.0
    %635 = vmatprep.subr.mxu0 0.0
    %636 = vmatpush1.msra.mxu0 0.0
    %637 = vmatprep.subr.mxu0 0.0
    %638 = vmatpush1.msra.mxu0 0.0
    %639 = vmatprep.subr.mxu0 0.0
    %640 = vmatpush1.msra.mxu0 0.0
    %641 = vmatprep.subr.mxu0 0.0
    %642 = vmatpush1.msra.mxu0 0.0
    %643 = vmatprep.subr.mxu0 0.0
    %644 = vmatpush1.msra.mxu0 0.0
    %645 = vmatprep.subr.mxu0 0.0
    %646 = vmatpush1.msra.mxu0 0.0
    %647 = vmatprep.subr.mxu0 %v261
    %648 = vmatpush1.msra.mxu0 %v260
    %649 = vmatprep.subr.mxu0 %v259
    %650 = vmatpush1.msra.mxu0 %v258
    %651 = vmatprep.subr.mxu0 %v257
    %652 = vmatpush1.msra.mxu0 %v256
    %653 = vmatprep.subr.mxu0 %v255
    %654 = vmatpush1.msra.mxu0 %v254
    %655 = vmatprep.subr.mxu0 %v253
    %656 = vmatpush1.msra.mxu0 %v252
    %657 = vmatprep.subr.mxu0 %v251
    %658 = vmatpush1.msra.mxu0 %v250
    %659 = vmatprep.subr.mxu0 %v249
    %660 = vmatpush1.msra.mxu0 %v248
    %661 = vmatprep.subr.mxu0 %v247
    %662 = vmatpush1.msra.mxu0 %v246
    %663 = vmatprep.subr.mxu0 0.0
    %664 = vmatpush2.msra.mxu0 0.0
    %665 = vmatprep.subr.mxu0 0.0
    %666 = vmatpush2.msra.mxu0 0.0
    %667 = vmatprep.subr.mxu0 0.0
    %668 = vmatpush2.msra.mxu0 0.0
    %669 = vmatprep.subr.mxu0 0.0
    %670 = vmatpush2.msra.mxu0 0.0
    %671 = vmatprep.subr.mxu0 0.0
    %672 = vmatpush2.msra.mxu0 0.0
    %673 = vmatprep.subr.mxu0 0.0
    %674 = vmatpush2.msra.mxu0 0.0
    %675 = vmatprep.subr.mxu0 0.0
    %676 = vmatpush2.msra.mxu0 0.0
    %677 = vmatprep.subr.mxu0 0.0
    %678 = vmatpush2.msra.mxu0 0.0
    %679 = vmatprep.subr.mxu0 0.0
    %680 = vmatpush2.msra.mxu0 0.0
    %681 = vmatprep.subr.mxu0 0.0
    %682 = vmatpush2.msra.mxu0 0.0
    %683 = vmatprep.subr.mxu0 0.0
    %684 = vmatpush2.msra.mxu0 0.0
    %685 = vmatprep.subr.mxu0 0.0
    %686 = vmatpush2.msra.mxu0 0.0
    %687 = vmatprep.subr.mxu0 0.0
    %688 = vmatpush2.msra.mxu0 0.0
    %689 = vmatprep.subr.mxu0 0.0
    %690 = vmatpush2.msra.mxu0 0.0
    %691 = vmatprep.subr.mxu0 0.0
    %692 = vmatpush2.msra.mxu0 0.0
    %693 = vmatprep.subr.mxu0 0.0
    %694 = vmatpush2.msra.mxu0 0.0
    %695 = vmatprep.mubr.f32.mxu0 0.0
    %696 = vmatmul.mubr.f32.gmra.mxu0 %v629
    %v697 = vpop.f32.mrf.mxu0
    %v698 = vadd.f32 0.0, %v697
    %v699 = vpop.f32.mrf.mxu0
    %v700 = vadd.f32 0.0, %v699
    %701 = vdwg.mxu0
    %v702 = vadd.f32 %v627, %v698
    %v703 = vadd.f32 %v628, %v700
    %v704 = vtanh.pop %v702
    %v705 = vtanh.pop %v703
    %v706 = vxor.u32 %v702, 2147483648
    %v707 = vxor.u32 %v703, 2147483648
    %v708 = vmul.f32 %v706, 1.442695
    %v709 = vpow.pop %v708
    %v710 = vmul.f32 %v707, 1.442695
    %v711 = vpow.pop %v710
    %v712 = vadd.f32 %v709, 1.0
    %v713 = vadd.f32 %v711, 1.0
    %v714 = vrcp.pop %v712
    %v715 = vmul.f32 1.0, %v714
    %v716 = vrcp.pop %v713
    %v717 = vmul.f32 1.0, %v716
    %v718 = vsel %vm244, %v704, %v715
    %v719 = vsel %vm245, %v705, %v717
    %v720 = vmul.f32 %v718, %v608
    %v721 = vmul.f32 %v718, %v719
    %723 = vrot.lane.b32.xlu0 %v721, 64
    %v724 = vpop.permute.xlu0 %723
    %v726 = vadd.f32 %v720, %v724
    %v727 = vtanh.pop %v726
    %v728 = vmul.f32 %v719, %v727
    %730 = vrot.lane.b32.xlu0 %v728, 64
    %v731 = vpop.permute.xlu0 %730
    %s733 = scalar_lea.vmem [#allocation3], 24
    %734 = vst.msk [vmem:[%s733] sm:$0xff] %vm274, %v731
    %v735 = vld [vmem:[%s624] sm:$0xff]
    %v736 = vld [vmem:[%s624 + $0x8] sm:$0xff]
    %v737 = vld [vmem:[%s619] sm:$0xff]
    %v738 = vld [vmem:[%s619 + $0x8] sm:$0xff]
    %v739 = vsel %vm238, %v735, %v737
    %v740 = vsel %vm239, %v736, %v738
    %v741 = vsel %vm274, %v731, 0
    %743 = vmatprep.subr.mxu0 0.0
    %744 = vmatpush1.msra.mxu0 0.0
    %745 = vmatprep.subr.mxu0 0.0
    %746 = vmatpush1.msra.mxu0 0.0
    %747 = vmatprep.subr.mxu0 0.0
    %748 = vmatpush1.msra.mxu0 0.0
    %749 = vmatprep.subr.mxu0 0.0
    %750 = vmatpush1.msra.mxu0 0.0
    %751 = vmatprep.subr.mxu0 0.0
    %752 = vmatpush1.msra.mxu0 0.0
    %753 = vmatprep.subr.mxu0 0.0
    %754 = vmatpush1.msra.mxu0 0.0
    %755 = vmatprep.subr.mxu0 0.0
    %756 = vmatpush1.msra.mxu0 0.0
    %757 = vmatprep.subr.mxu0 0.0
    %758 = vmatpush1.msra.mxu0 0.0
    %759 = vmatprep.subr.mxu0 %v261
    %760 = vmatpush1.msra.mxu0 %v260
    %761 = vmatprep.subr.mxu0 %v259
    %762 = vmatpush1.msra.mxu0 %v258
    %763 = vmatprep.subr.mxu0 %v257
    %764 = vmatpush1.msra.mxu0 %v256
    %765 = vmatprep.subr.mxu0 %v255
    %766 = vmatpush1.msra.mxu0 %v254
    %767 = vmatprep.subr.mxu0 %v253
    %768 = vmatpush1.msra.mxu0 %v252
    %769 = vmatprep.subr.mxu0 %v251
    %770 = vmatpush1.msra.mxu0 %v250
    %771 = vmatprep.subr.mxu0 %v249
    %772 = vmatpush1.msra.mxu0 %v248
    %773 = vmatprep.subr.mxu0 %v247
    %774 = vmatpush1.msra.mxu0 %v246
    %775 = vmatprep.subr.mxu0 0.0
    %776 = vmatpush2.msra.mxu0 0.0
    %777 = vmatprep.subr.mxu0 0.0
    %778 = vmatpush2.msra.mxu0 0.0
    %779 = vmatprep.subr.mxu0 0.0
    %780 = vmatpush2.msra.mxu0 0.0
    %781 = vmatprep.subr.mxu0 0.0
    %782 = vmatpush2.msra.mxu0 0.0
    %783 = vmatprep.subr.mxu0 0.0
    %784 = vmatpush2.msra.mxu0 0.0
    %785 = vmatprep.subr.mxu0 0.0
    %786 = vmatpush2.msra.mxu0 0.0
    %787 = vmatprep.subr.mxu0 0.0
    %788 = vmatpush2.msra.mxu0 0.0
    %789 = vmatprep.subr.mxu0 0.0
    %790 = vmatpush2.msra.mxu0 0.0
    %791 = vmatprep.subr.mxu0 0.0
    %792 = vmatpush2.msra.mxu0 0.0
    %793 = vmatprep.subr.mxu0 0.0
    %794 = vmatpush2.msra.mxu0 0.0
    %795 = vmatprep.subr.mxu0 0.0
    %796 = vmatpush2.msra.mxu0 0.0
    %797 = vmatprep.subr.mxu0 0.0
    %798 = vmatpush2.msra.mxu0 0.0
    %799 = vmatprep.subr.mxu0 0.0
    %800 = vmatpush2.msra.mxu0 0.0
    %801 = vmatprep.subr.mxu0 0.0
    %802 = vmatpush2.msra.mxu0 0.0
    %803 = vmatprep.subr.mxu0 0.0
    %804 = vmatpush2.msra.mxu0 0.0
    %805 = vmatprep.subr.mxu0 0.0
    %806 = vmatpush2.msra.mxu0 0.0
    %807 = vmatprep.mubr.f32.mxu0 0.0
    %808 = vmatmul.mubr.f32.gmra.mxu0 %v741
    %v809 = vpop.f32.mrf.mxu0
    %v810 = vadd.f32 0.0, %v809
    %v811 = vpop.f32.mrf.mxu0
    %v812 = vadd.f32 0.0, %v811
    %813 = vdwg.mxu0
    %v814 = vadd.f32 %v739, %v810
    %v815 = vadd.f32 %v740, %v812
    %v816 = vtanh.pop %v814
    %v817 = vtanh.pop %v815
    %v818 = vxor.u32 %v814, 2147483648
    %v819 = vxor.u32 %v815, 2147483648
    %v820 = vmul.f32 %v818, 1.442695
    %v821 = vpow.pop %v820
    %v822 = vmul.f32 %v819, 1.442695
    %v823 = vpow.pop %v822
    %v824 = vadd.f32 %v821, 1.0
    %v825 = vadd.f32 %v823, 1.0
    %v826 = vrcp.pop %v824
    %v827 = vmul.f32 1.0, %v826
    %v828 = vrcp.pop %v825
    %v829 = vmul.f32 1.0, %v828
    %v830 = vsel %vm244, %v816, %v827
    %v831 = vsel %vm245, %v817, %v829
    %v832 = vmul.f32 %v830, %v726
    %v833 = vmul.f32 %v830, %v831
    %835 = vrot.lane.b32.xlu0 %v833, 64
    %v836 = vpop.permute.xlu0 %835
    %v838 = vadd.f32 %v832, %v836
    %v839 = vtanh.pop %v838
    %v840 = vmul.f32 %v831, %v839
    %842 = vrot.lane.b32.xlu0 %v840, 64
    %v843 = vpop.permute.xlu0 %842
    %s845 = scalar_lea.vmem [#allocation3], 32
    %846 = vst.msk [vmem:[%s845] sm:$0xff] %vm274, %v843
    %v847 = vld [vmem:[%s506] sm:$0xff]
    %v848 = vld [vmem:[%s506 + $0x8] sm:$0xff]
    %v849 = vld [vmem:[%s501] sm:$0xff]
    %v850 = vld [vmem:[%s501 + $0x8] sm:$0xff]
    %v851 = vsel %vm238, %v847, %v849
    %v852 = vsel %vm239, %v848, %v850
    %v853 = vsel %vm274, %v843, 0
    %855 = vmatprep.subr.mxu0 0.0
    %856 = vmatpush1.msra.mxu0 0.0
    %857 = vmatprep.subr.mxu0 0.0
    %858 = vmatpush1.msra.mxu0 0.0
    %859 = vmatprep.subr.mxu0 0.0
    %860 = vmatpush1.msra.mxu0 0.0
    %861 = vmatprep.subr.mxu0 0.0
    %862 = vmatpush1.msra.mxu0 0.0
    %863 = vmatprep.subr.mxu0 0.0
    %864 = vmatpush1.msra.mxu0 0.0
    %865 = vmatprep.subr.mxu0 0.0
    %866 = vmatpush1.msra.mxu0 0.0
    %867 = vmatprep.subr.mxu0 0.0
    %868 = vmatpush1.msra.mxu0 0.0
    %869 = vmatprep.subr.mxu0 0.0
    %870 = vmatpush1.msra.mxu0 0.0
    %871 = vmatprep.subr.mxu0 %v261
    %872 = vmatpush1.msra.mxu0 %v260
    %873 = vmatprep.subr.mxu0 %v259
    %874 = vmatpush1.msra.mxu0 %v258
    %875 = vmatprep.subr.mxu0 %v257
    %876 = vmatpush1.msra.mxu0 %v256
    %877 = vmatprep.subr.mxu0 %v255
    %878 = vmatpush1.msra.mxu0 %v254
    %879 = vmatprep.subr.mxu0 %v253
    %880 = vmatpush1.msra.mxu0 %v252
    %881 = vmatprep.subr.mxu0 %v251
    %882 = vmatpush1.msra.mxu0 %v250
    %883 = vmatprep.subr.mxu0 %v249
    %884 = vmatpush1.msra.mxu0 %v248
    %885 = vmatprep.subr.mxu0 %v247
    %886 = vmatpush1.msra.mxu0 %v246
    %887 = vmatprep.subr.mxu0 0.0
    %888 = vmatpush2.msra.mxu0 0.0
    %889 = vmatprep.subr.mxu0 0.0
    %890 = vmatpush2.msra.mxu0 0.0
    %891 = vmatprep.subr.mxu0 0.0
    %892 = vmatpush2.msra.mxu0 0.0
    %893 = vmatprep.subr.mxu0 0.0
    %894 = vmatpush2.msra.mxu0 0.0
    %895 = vmatprep.subr.mxu0 0.0
    %896 = vmatpush2.msra.mxu0 0.0
    %897 = vmatprep.subr.mxu0 0.0
    %898 = vmatpush2.msra.mxu0 0.0
    %899 = vmatprep.subr.mxu0 0.0
    %900 = vmatpush2.msra.mxu0 0.0
    %901 = vmatprep.subr.mxu0 0.0
    %902 = vmatpush2.msra.mxu0 0.0
    %903 = vmatprep.subr.mxu0 0.0
    %904 = vmatpush2.msra.mxu0 0.0
    %905 = vmatprep.subr.mxu0 0.0
    %906 = vmatpush2.msra.mxu0 0.0
    %907 = vmatprep.subr.mxu0 0.0
    %908 = vmatpush2.msra.mxu0 0.0
    %909 = vmatprep.subr.mxu0 0.0
    %910 = vmatpush2.msra.mxu0 0.0
    %911 = vmatprep.subr.mxu0 0.0
    %912 = vmatpush2.msra.mxu0 0.0
    %913 = vmatprep.subr.mxu0 0.0
    %914 = vmatpush2.msra.mxu0 0.0
    %915 = vmatprep.subr.mxu0 0.0
    %916 = vmatpush2.msra.mxu0 0.0
    %917 = vmatprep.subr.mxu0 0.0
    %918 = vmatpush2.msra.mxu0 0.0
    %919 = vmatprep.mubr.f32.mxu0 0.0
    %920 = vmatmul.mubr.f32.gmra.mxu0 %v853
    %v921 = vpop.f32.mrf.mxu0
    %v922 = vadd.f32 0.0, %v921
    %v923 = vpop.f32.mrf.mxu0
    %v924 = vadd.f32 0.0, %v923
    %925 = vdwg.mxu0
    %v926 = vadd.f32 %v851, %v922
    %v927 = vadd.f32 %v852, %v924
    %v928 = vtanh.pop %v926
    %v929 = vtanh.pop %v927
    %v930 = vxor.u32 %v926, 2147483648
    %v931 = vxor.u32 %v927, 2147483648
    %v932 = vmul.f32 %v930, 1.442695
    %v933 = vpow.pop %v932
    %v934 = vmul.f32 %v931, 1.442695
    %v935 = vpow.pop %v934
    %v936 = vadd.f32 %v933, 1.0
    %v937 = vadd.f32 %v935, 1.0
    %v938 = vrcp.pop %v936
    %v939 = vmul.f32 1.0, %v938
    %v940 = vrcp.pop %v937
    %v941 = vmul.f32 1.0, %v940
    %v942 = vsel %vm244, %v928, %v939
    %v943 = vsel %vm245, %v929, %v941
    %v944 = vmul.f32 %v942, %v838
    %v945 = vmul.f32 %v942, %v943
    %947 = vrot.lane.b32.xlu0 %v945, 64
    %v948 = vpop.permute.xlu0 %947
    %v950 = vadd.f32 %v944, %v948
    %v951 = vtanh.pop %v950
    %v952 = vmul.f32 %v943, %v951
    %954 = vrot.lane.b32.xlu0 %v952, 64
    %v955 = vpop.permute.xlu0 %954
    %s957 = scalar_lea.vmem [#allocation3], 40
    %958 = vst.msk [vmem:[%s957] sm:$0xff] %vm274, %v955
    %v959 = vld [vmem:[%s388] sm:$0xff]
    %v960 = vld [vmem:[%s388 + $0x8] sm:$0xff]
    %v961 = vld [vmem:[%s383] sm:$0xff]
    %v962 = vld [vmem:[%s383 + $0x8] sm:$0xff]
    %v963 = vsel %vm238, %v959, %v961
    %v964 = vsel %vm239, %v960, %v962
    %v965 = vsel %vm274, %v955, 0
    %967 = vmatprep.subr.mxu0 0.0
    %968 = vmatpush1.msra.mxu0 0.0
    %969 = vmatprep.subr.mxu0 0.0
    %970 = vmatpush1.msra.mxu0 0.0
    %971 = vmatprep.subr.mxu0 0.0
    %972 = vmatpush1.msra.mxu0 0.0
    %973 = vmatprep.subr.mxu0 0.0
    %974 = vmatpush1.msra.mxu0 0.0
    %975 = vmatprep.subr.mxu0 0.0
    %976 = vmatpush1.msra.mxu0 0.0
    %977 = vmatprep.subr.mxu0 0.0
    %978 = vmatpush1.msra.mxu0 0.0
    %979 = vmatprep.subr.mxu0 0.0
    %980 = vmatpush1.msra.mxu0 0.0
    %981 = vmatprep.subr.mxu0 0.0
    %982 = vmatpush1.msra.mxu0 0.0
    %983 = vmatprep.subr.mxu0 %v261
    %984 = vmatpush1.msra.mxu0 %v260
    %985 = vmatprep.subr.mxu0 %v259
    %986 = vmatpush1.msra.mxu0 %v258
    %987 = vmatprep.subr.mxu0 %v257
    %988 = vmatpush1.msra.mxu0 %v256
    %989 = vmatprep.subr.mxu0 %v255
    %990 = vmatpush1.msra.mxu0 %v254
    %991 = vmatprep.subr.mxu0 %v253
    %992 = vmatpush1.msra.mxu0 %v252
    %993 = vmatprep.subr.mxu0 %v251
    %994 = vmatpush1.msra.mxu0 %v250
    %995 = vmatprep.subr.mxu0 %v249
    %996 = vmatpush1.msra.mxu0 %v248
    %997 = vmatprep.subr.mxu0 %v247
    %998 = vmatpush1.msra.mxu0 %v246
    %999 = vmatprep.subr.mxu0 0.0
    %1000 = vmatpush2.msra.mxu0 0.0
    %1001 = vmatprep.subr.mxu0 0.0
    %1002 = vmatpush2.msra.mxu0 0.0
    %1003 = vmatprep.subr.mxu0 0.0
    %1004 = vmatpush2.msra.mxu0 0.0
    %1005 = vmatprep.subr.mxu0 0.0
    %1006 = vmatpush2.msra.mxu0 0.0
    %1007 = vmatprep.subr.mxu0 0.0
    %1008 = vmatpush2.msra.mxu0 0.0
    %1009 = vmatprep.subr.mxu0 0.0
    %1010 = vmatpush2.msra.mxu0 0.0
    %1011 = vmatprep.subr.mxu0 0.0
    %1012 = vmatpush2.msra.mxu0 0.0
    %1013 = vmatprep.subr.mxu0 0.0
    %1014 = vmatpush2.msra.mxu0 0.0
    %1015 = vmatprep.subr.mxu0 0.0
    %1016 = vmatpush2.msra.mxu0 0.0
    %1017 = vmatprep.subr.mxu0 0.0
    %1018 = vmatpush2.msra.mxu0 0.0
    %1019 = vmatprep.subr.mxu0 0.0
    %1020 = vmatpush2.msra.mxu0 0.0
    %1021 = vmatprep.subr.mxu0 0.0
    %1022 = vmatpush2.msra.mxu0 0.0
    %1023 = vmatprep.subr.mxu0 0.0
    %1024 = vmatpush2.msra.mxu0 0.0
    %1025 = vmatprep.subr.mxu0 0.0
    %1026 = vmatpush2.msra.mxu0 0.0
    %1027 = vmatprep.subr.mxu0 0.0
    %1028 = vmatpush2.msra.mxu0 0.0
    %1029 = vmatprep.subr.mxu0 0.0
    %1030 = vmatpush2.msra.mxu0 0.0
    %1031 = vmatprep.mubr.f32.mxu0 0.0
    %1032 = vmatmul.mubr.f32.gmra.mxu0 %v965
    %v1033 = vpop.f32.mrf.mxu0
    %v1034 = vadd.f32 0.0, %v1033
    %v1035 = vpop.f32.mrf.mxu0
    %v1036 = vadd.f32 0.0, %v1035
    %1037 = vdwg.mxu0
    %v1038 = vadd.f32 %v963, %v1034
    %v1039 = vadd.f32 %v964, %v1036
    %v1040 = vtanh.pop %v1038
    %v1041 = vtanh.pop %v1039
    %v1042 = vxor.u32 %v1038, 2147483648
    %v1043 = vxor.u32 %v1039, 2147483648
    %v1044 = vmul.f32 %v1042, 1.442695
    %v1045 = vpow.pop %v1044
    %v1046 = vmul.f32 %v1043, 1.442695
    %v1047 = vpow.pop %v1046
    %v1048 = vadd.f32 %v1045, 1.0
    %v1049 = vadd.f32 %v1047, 1.0
    %v1050 = vrcp.pop %v1048
    %v1051 = vmul.f32 1.0, %v1050
    %v1052 = vrcp.pop %v1049
    %v1053 = vmul.f32 1.0, %v1052
    %v1054 = vsel %vm244, %v1040, %v1051
    %v1055 = vsel %vm245, %v1041, %v1053
    %v1056 = vmul.f32 %v1054, %v950
    %v1057 = vmul.f32 %v1054, %v1055
    %1059 = vrot.lane.b32.xlu0 %v1057, 64
    %v1060 = vpop.permute.xlu0 %1059
    %v1062 = vadd.f32 %v1056, %v1060
    %v1063 = vtanh.pop %v1062
    %v1064 = vmul.f32 %v1055, %v1063
    %1066 = vrot.lane.b32.xlu0 %v1064, 64
    %v1067 = vpop.permute.xlu0 %1066
    %s1069 = scalar_lea.vmem [#allocation3], 48
    %1070 = vst.msk [vmem:[%s1069] sm:$0xff] %vm274, %v1067
    %v1071 = vld [vmem:[%s269] sm:$0xff]
    %v1072 = vld [vmem:[%s269 + $0x8] sm:$0xff]
    %v1073 = vld [vmem:[%s264] sm:$0xff]
    %v1074 = vld [vmem:[%s264 + $0x8] sm:$0xff]
    %v1075 = vsel %vm238, %v1071, %v1073
    %v1076 = vsel %vm239, %v1072, %v1074
    %v1077 = vsel %vm274, %v1067, 0
    %1079 = vmatprep.subr.mxu0 0.0
    %1080 = vmatpush1.msra.mxu0 0.0
    %1081 = vmatprep.subr.mxu0 0.0
    %1082 = vmatpush1.msra.mxu0 0.0
    %1083 = vmatprep.subr.mxu0 0.0
    %1084 = vmatpush1.msra.mxu0 0.0
    %1085 = vmatprep.subr.mxu0 0.0
    %1086 = vmatpush1.msra.mxu0 0.0
    %1087 = vmatprep.subr.mxu0 0.0
    %1088 = vmatpush1.msra.mxu0 0.0
    %1089 = vmatprep.subr.mxu0 0.0
    %1090 = vmatpush1.msra.mxu0 0.0
    %1091 = vmatprep.subr.mxu0 0.0
    %1092 = vmatpush1.msra.mxu0 0.0
    %1093 = vmatprep.subr.mxu0 0.0
    %1094 = vmatpush1.msra.mxu0 0.0
    %1095 = vmatprep.subr.mxu0 %v261
    %1096 = vmatpush1.msra.mxu0 %v260
    %1097 = vmatprep.subr.mxu0 %v259
    %1098 = vmatpush1.msra.mxu0 %v258
    %1099 = vmatprep.subr.mxu0 %v257
    %1100 = vmatpush1.msra.mxu0 %v256
    %1101 = vmatprep.subr.mxu0 %v255
    %1102 = vmatpush1.msra.mxu0 %v254
    %1103 = vmatprep.subr.mxu0 %v253
    %1104 = vmatpush1.msra.mxu0 %v252
    %1105 = vmatprep.subr.mxu0 %v251
    %1106 = vmatpush1.msra.mxu0 %v250
    %1107 = vmatprep.subr.mxu0 %v249
    %1108 = vmatpush1.msra.mxu0 %v248
    %1109 = vmatprep.subr.mxu0 %v247
    %1110 = vmatpush1.msra.mxu0 %v246
    %1111 = vmatprep.subr.mxu0 0.0
    %1112 = vmatpush2.msra.mxu0 0.0
    %1113 = vmatprep.subr.mxu0 0.0
    %1114 = vmatpush2.msra.mxu0 0.0
    %1115 = vmatprep.subr.mxu0 0.0
    %1116 = vmatpush2.msra.mxu0 0.0
    %1117 = vmatprep.subr.mxu0 0.0
    %1118 = vmatpush2.msra.mxu0 0.0
    %1119 = vmatprep.subr.mxu0 0.0
    %1120 = vmatpush2.msra.mxu0 0.0
    %1121 = vmatprep.subr.mxu0 0.0
    %1122 = vmatpush2.msra.mxu0 0.0
    %1123 = vmatprep.subr.mxu0 0.0
    %1124 = vmatpush2.msra.mxu0 0.0
    %1125 = vmatprep.subr.mxu0 0.0
    %1126 = vmatpush2.msra.mxu0 0.0
    %1127 = vmatprep.subr.mxu0 0.0
    %1128 = vmatpush2.msra.mxu0 0.0
    %1129 = vmatprep.subr.mxu0 0.0
    %1130 = vmatpush2.msra.mxu0 0.0
    %1131 = vmatprep.subr.mxu0 0.0
    %1132 = vmatpush2.msra.mxu0 0.0
    %1133 = vmatprep.subr.mxu0 0.0
    %1134 = vmatpush2.msra.mxu0 0.0
    %1135 = vmatprep.subr.mxu0 0.0
    %1136 = vmatpush2.msra.mxu0 0.0
    %1137 = vmatprep.subr.mxu0 0.0
    %1138 = vmatpush2.msra.mxu0 0.0
    %1139 = vmatprep.subr.mxu0 0.0
    %1140 = vmatpush2.msra.mxu0 0.0
    %1141 = vmatprep.subr.mxu0 0.0
    %1142 = vmatpush2.msra.mxu0 0.0
    %1143 = vmatprep.mubr.f32.mxu0 0.0
    %1144 = vmatmul.mubr.f32.gmra.mxu0 %v1077
    %v1145 = vpop.f32.mrf.mxu0
    %v1146 = vadd.f32 0.0, %v1145
    %v1147 = vpop.f32.mrf.mxu0
    %v1148 = vadd.f32 0.0, %v1147
    %1149 = vdwg.mxu0
    %v1150 = vadd.f32 %v1075, %v1146
    %v1151 = vadd.f32 %v1076, %v1148
    %v1152 = vtanh.pop %v1150
    %v1153 = vtanh.pop %v1151
    %v1154 = vxor.u32 %v1150, 2147483648
    %v1155 = vxor.u32 %v1151, 2147483648
    %v1156 = vmul.f32 %v1154, 1.442695
    %v1157 = vpow.pop %v1156
    %v1158 = vmul.f32 %v1155, 1.442695
    %v1159 = vpow.pop %v1158
    %v1160 = vadd.f32 %v1157, 1.0
    %v1161 = vadd.f32 %v1159, 1.0
    %v1162 = vrcp.pop %v1160
    %v1163 = vmul.f32 1.0, %v1162
    %v1164 = vrcp.pop %v1161
    %v1165 = vmul.f32 1.0, %v1164
    %v1166 = vsel %vm244, %v1152, %v1163
    %v1167 = vsel %vm245, %v1153, %v1165
    %v1168 = vmul.f32 %v1166, %v1062
    %v1169 = vmul.f32 %v1166, %v1167
    %1171 = vrot.lane.b32.xlu0 %v1169, 64
    %v1172 = vpop.permute.xlu0 %1171
    %v1174 = vadd.f32 %v1168, %v1172
    %v1175 = vtanh.pop %v1174
    %v1176 = vmul.f32 %v1167, %v1175
    %1178 = vrot.lane.b32.xlu0 %v1176, 64
    %v1179 = vpop.permute.xlu0 %1178
    %s1181 = scalar_lea.vmem [#allocation3], 56
    %1182 = vst.msk [vmem:[%s1181] sm:$0xff] %vm274, %v1179
    %v1183 = vld [vmem:[#allocation3] sm:$0xff]
    %v1184 = vld [vmem:[#allocation3 + $0x8] sm:$0xff]
    %v1185 = vld [vmem:[#allocation3 + $0x10] sm:$0xff]
    %v1186 = vld [vmem:[#allocation3 + $0x18] sm:$0xff]
    %v1187 = vld [vmem:[#allocation3 + $0x20] sm:$0xff]
    %v1188 = vld [vmem:[#allocation3 + $0x28] sm:$0xff]
    %v1189 = vld [vmem:[#allocation3 + $0x30] sm:$0xff]
    %v1190 = vld [vmem:[#allocation3 + $0x38] sm:$0xff]
    %v1191 = vld [vmem:[%s7] sm:$0xff]
    %v1192 = vld [vmem:[%s7 + $0x8] sm:$0xff]
    %v1193 = vld [vmem:[%s7 + $0x10] sm:$0xff]
    %v1194 = vld [vmem:[%s7 + $0x18] sm:$0xff]
    %v1195 = vld [vmem:[%s7 + $0x20] sm:$0xff]
    %v1196 = vld [vmem:[%s7 + $0x28] sm:$0xff]
    %v1197 = vld [vmem:[%s7 + $0x30] sm:$0xff]
    %v1198 = vld [vmem:[%s7 + $0x38] sm:$0xff]
    %v1200 = vsel %vm274, %v1191, 0
    %v1203 = vsel %vm274, %v1192, 0
    %v1206 = vsel %vm274, %v1193, 0
    %v1209 = vsel %vm274, %v1194, 0
    %v1212 = vsel %vm274, %v1195, 0
    %v1215 = vsel %vm274, %v1196, 0
    %v1218 = vsel %vm274, %v1197, 0
    %v1221 = vsel %vm274, %v1198, 0
    %1223 = vmatprep.subr.mxu0 0.0
    %1224 = vmatpush1.msra.mxu0 0.0
    %1225 = vmatprep.subr.mxu0 0.0
    %1226 = vmatpush1.msra.mxu0 0.0
    %1227 = vmatprep.subr.mxu0 0.0
    %1228 = vmatpush1.msra.mxu0 0.0
    %1229 = vmatprep.subr.mxu0 0.0
    %1230 = vmatpush1.msra.mxu0 0.0
    %1231 = vmatprep.subr.mxu0 0.0
    %1232 = vmatpush1.msra.mxu0 0.0
    %1233 = vmatprep.subr.mxu0 0.0
    %1234 = vmatpush1.msra.mxu0 0.0
    %1235 = vmatprep.subr.mxu0 0.0
    %1236 = vmatpush1.msra.mxu0 0.0
    %1237 = vmatprep.subr.mxu0 0.0
    %1238 = vmatpush1.msra.mxu0 0.0
    %1239 = vmatprep.subr.mxu0 0.0
    %1240 = vmatpush1.msra.mxu0 %v1190
    %1241 = vmatprep.subr.mxu0 0.0
    %1242 = vmatpush1.msra.mxu0 %v1189
    %1243 = vmatprep.subr.mxu0 0.0
    %1244 = vmatpush1.msra.mxu0 %v1188
    %1245 = vmatprep.subr.mxu0 0.0
    %1246 = vmatpush1.msra.mxu0 %v1187
    %1247 = vmatprep.subr.mxu0 0.0
    %1248 = vmatpush1.msra.mxu0 %v1186
    %1249 = vmatprep.subr.mxu0 0.0
    %1250 = vmatpush1.msra.mxu0 %v1185
    %1251 = vmatprep.subr.mxu0 0.0
    %1252 = vmatpush1.msra.mxu0 %v1184
    %1253 = vmatprep.subr.mxu0 0.0
    %1254 = vmatpush1.msra.mxu0 %v1183
    %1255 = vmatprep.subr.mxu0 0.0
    %1256 = vmatpush2.msra.mxu0 0.0
    %1257 = vmatprep.subr.mxu0 0.0
    %1258 = vmatpush2.msra.mxu0 0.0
    %1259 = vmatprep.subr.mxu0 0.0
    %1260 = vmatpush2.msra.mxu0 0.0
    %1261 = vmatprep.subr.mxu0 0.0
    %1262 = vmatpush2.msra.mxu0 0.0
    %1263 = vmatprep.subr.mxu0 0.0
    %1264 = vmatpush2.msra.mxu0 0.0
    %1265 = vmatprep.subr.mxu0 0.0
    %1266 = vmatpush2.msra.mxu0 0.0
    %1267 = vmatprep.subr.mxu0 0.0
    %1268 = vmatpush2.msra.mxu0 0.0
    %1269 = vmatprep.subr.mxu0 0.0
    %1270 = vmatpush2.msra.mxu0 0.0
    %1271 = vmatprep.subr.mxu0 0.0
    %1272 = vmatpush2.msra.mxu0 0.0
    %1273 = vmatprep.subr.mxu0 0.0
    %1274 = vmatpush2.msra.mxu0 0.0
    %1275 = vmatprep.subr.mxu0 0.0
    %1276 = vmatpush2.msra.mxu0 0.0
    %1277 = vmatprep.subr.mxu0 0.0
    %1278 = vmatpush2.msra.mxu0 0.0
    %1279 = vmatprep.subr.mxu0 0.0
    %1280 = vmatpush2.msra.mxu0 0.0
    %1281 = vmatprep.subr.mxu0 0.0
    %1282 = vmatpush2.msra.mxu0 0.0
    %1283 = vmatprep.subr.mxu0 0.0
    %1284 = vmatpush2.msra.mxu0 0.0
    %1285 = vmatprep.subr.mxu0 0.0
    %1286 = vmatpush2.msra.mxu0 0.0
    %1287 = vmatprep.mubr.f32.mxu0 0.0
    %1288 = vmatmul.mubr.f32.gmra.mxu0 %v1200
    %v1289 = vpop.f32.mrf.mxu0
    %v1290 = vadd.f32 0.0, %v1289
    %v1291 = vpop.f32.mrf.mxu0
    %1292 = vmatprep.mubr.f32.mxu0 0.0
    %1293 = vmatmul.mubr.f32.gmra.mxu0 %v1203
    %v1294 = vpop.f32.mrf.mxu0
    %v1295 = vadd.f32 0.0, %v1294
    %v1296 = vpop.f32.mrf.mxu0
    %1297 = vmatprep.mubr.f32.mxu0 0.0
    %1298 = vmatmul.mubr.f32.gmra.mxu0 %v1206
    %v1299 = vpop.f32.mrf.mxu0
    %v1300 = vadd.f32 0.0, %v1299
    %v1301 = vpop.f32.mrf.mxu0
    %1302 = vmatprep.mubr.f32.mxu0 0.0
    %1303 = vmatmul.mubr.f32.gmra.mxu0 %v1209
    %v1304 = vpop.f32.mrf.mxu0
    %v1305 = vadd.f32 0.0, %v1304
    %v1306 = vpop.f32.mrf.mxu0
    %1307 = vmatprep.mubr.f32.mxu0 0.0
    %1308 = vmatmul.mubr.f32.gmra.mxu0 %v1212
    %v1309 = vpop.f32.mrf.mxu0
    %v1310 = vadd.f32 0.0, %v1309
    %v1311 = vpop.f32.mrf.mxu0
    %1312 = vmatprep.mubr.f32.mxu0 0.0
    %1313 = vmatmul.mubr.f32.gmra.mxu0 %v1215
    %v1314 = vpop.f32.mrf.mxu0
    %v1315 = vadd.f32 0.0, %v1314
    %v1316 = vpop.f32.mrf.mxu0
    %1317 = vmatprep.mubr.f32.mxu0 0.0
    %1318 = vmatmul.mubr.f32.gmra.mxu0 %v1218
    %v1319 = vpop.f32.mrf.mxu0
    %v1320 = vadd.f32 0.0, %v1319
    %v1321 = vpop.f32.mrf.mxu0
    %1322 = vmatprep.mubr.f32.mxu0 0.0
    %1323 = vmatmul.mubr.f32.gmra.mxu0 %v1221
    %v1324 = vpop.f32.mrf.mxu0
    %v1325 = vadd.f32 0.0, %v1324
    %v1326 = vpop.f32.mrf.mxu0
    %1327 = vdwg.mxu0
    %v1328 = vld [vmem:[%s8] sm:$0xff]
    %v1329 = vld [vmem:[%s8 + $0x8] sm:$0xff]
    %v1330 = vld [vmem:[%s8 + $0x10] sm:$0xff]
    %v1331 = vld [vmem:[%s8 + $0x18] sm:$0xff]
    %v1332 = vld [vmem:[%s8 + $0x20] sm:$0xff]
    %v1333 = vld [vmem:[%s8 + $0x28] sm:$0xff]
    %v1334 = vld [vmem:[%s8 + $0x30] sm:$0xff]
    %v1335 = vld [vmem:[%s8 + $0x38] sm:$0xff]
    %1344 = vrot.lane.b32.xlu0 %v1183, 96
    %v1345 = vpop.permute.xlu0 %1344
    %1346 = vrot.lane.b32.xlu0 %v1184, 96
    %v1347 = vpop.permute.xlu0 %1346
    %1348 = vrot.lane.b32.xlu0 %v1185, 96
    %v1349 = vpop.permute.xlu0 %1348
    %1350 = vrot.lane.b32.xlu0 %v1186, 96
    %v1351 = vpop.permute.xlu0 %1350
    %1352 = vrot.lane.b32.xlu0 %v1187, 96
    %v1353 = vpop.permute.xlu0 %1352
    %1354 = vrot.lane.b32.xlu0 %v1188, 96
    %v1355 = vpop.permute.xlu0 %1354
    %1356 = vrot.lane.b32.xlu0 %v1189, 96
    %v1357 = vpop.permute.xlu0 %1356
    %1358 = vrot.lane.b32.xlu0 %v1190, 96
    %v1359 = vpop.permute.xlu0 %1358
    %v1369 = vsel %vm274, %v1328, 0
    %v1372 = vsel %vm274, %v1329, 0
    %v1375 = vsel %vm274, %v1330, 0
    %v1378 = vsel %vm274, %v1331, 0
    %v1381 = vsel %vm274, %v1332, 0
    %v1384 = vsel %vm274, %v1333, 0
    %v1387 = vsel %vm274, %v1334, 0
    %v1390 = vsel %vm274, %v1335, 0
    %1392 = vmatprep.subr.mxu0 0.0
    %1393 = vmatpush1.msra.mxu0 0.0
    %1394 = vmatprep.subr.mxu0 0.0
    %1395 = vmatpush1.msra.mxu0 0.0
    %1396 = vmatprep.subr.mxu0 0.0
    %1397 = vmatpush1.msra.mxu0 0.0
    %1398 = vmatprep.subr.mxu0 0.0
    %1399 = vmatpush1.msra.mxu0 0.0
    %1400 = vmatprep.subr.mxu0 0.0
    %1401 = vmatpush1.msra.mxu0 0.0
    %1402 = vmatprep.subr.mxu0 0.0
    %1403 = vmatpush1.msra.mxu0 0.0
    %1404 = vmatprep.subr.mxu0 0.0
    %1405 = vmatpush1.msra.mxu0 0.0
    %1406 = vmatprep.subr.mxu0 0.0
    %1407 = vmatpush1.msra.mxu0 0.0
    %1408 = vmatprep.subr.mxu0 0.0
    %1409 = vmatpush1.msra.mxu0 %v1359
    %1410 = vmatprep.subr.mxu0 0.0
    %1411 = vmatpush1.msra.mxu0 %v1357
    %1412 = vmatprep.subr.mxu0 0.0
    %1413 = vmatpush1.msra.mxu0 %v1355
    %1414 = vmatprep.subr.mxu0 0.0
    %1415 = vmatpush1.msra.mxu0 %v1353
    %1416 = vmatprep.subr.mxu0 0.0
    %1417 = vmatpush1.msra.mxu0 %v1351
    %1418 = vmatprep.subr.mxu0 0.0
    %1419 = vmatpush1.msra.mxu0 %v1349
    %1420 = vmatprep.subr.mxu0 0.0
    %1421 = vmatpush1.msra.mxu0 %v1347
    %1422 = vmatprep.subr.mxu0 0.0
    %1423 = vmatpush1.msra.mxu0 %v1345
    %1424 = vmatprep.subr.mxu0 0.0
    %1425 = vmatpush2.msra.mxu0 0.0
    %1426 = vmatprep.subr.mxu0 0.0
    %1427 = vmatpush2.msra.mxu0 0.0
    %1428 = vmatprep.subr.mxu0 0.0
    %1429 = vmatpush2.msra.mxu0 0.0
    %1430 = vmatprep.subr.mxu0 0.0
    %1431 = vmatpush2.msra.mxu0 0.0
    %1432 = vmatprep.subr.mxu0 0.0
    %1433 = vmatpush2.msra.mxu0 0.0
    %1434 = vmatprep.subr.mxu0 0.0
    %1435 = vmatpush2.msra.mxu0 0.0
    %1436 = vmatprep.subr.mxu0 0.0
    %1437 = vmatpush2.msra.mxu0 0.0
    %1438 = vmatprep.subr.mxu0 0.0
    %1439 = vmatpush2.msra.mxu0 0.0
    %1440 = vmatprep.subr.mxu0 0.0
    %1441 = vmatpush2.msra.mxu0 0.0
    %1442 = vmatprep.subr.mxu0 0.0
    %1443 = vmatpush2.msra.mxu0 0.0
    %1444 = vmatprep.subr.mxu0 0.0
    %1445 = vmatpush2.msra.mxu0 0.0
    %1446 = vmatprep.subr.mxu0 0.0
    %1447 = vmatpush2.msra.mxu0 0.0
    %1448 = vmatprep.subr.mxu0 0.0
    %1449 = vmatpush2.msra.mxu0 0.0
    %1450 = vmatprep.subr.mxu0 0.0
    %1451 = vmatpush2.msra.mxu0 0.0
    %1452 = vmatprep.subr.mxu0 0.0
    %1453 = vmatpush2.msra.mxu0 0.0
    %1454 = vmatprep.subr.mxu0 0.0
    %1455 = vmatpush2.msra.mxu0 0.0
    %1456 = vmatprep.mubr.f32.mxu0 0.0
    %1457 = vmatmul.mubr.f32.gmra.mxu0 %v1369
    %v1458 = vpop.f32.mrf.mxu0
    %v1459 = vadd.f32 0.0, %v1458
    %v1460 = vpop.f32.mrf.mxu0
    %1461 = vmatprep.mubr.f32.mxu0 0.0
    %1462 = vmatmul.mubr.f32.gmra.mxu0 %v1372
    %v1463 = vpop.f32.mrf.mxu0
    %v1464 = vadd.f32 0.0, %v1463
    %v1465 = vpop.f32.mrf.mxu0
    %1466 = vmatprep.mubr.f32.mxu0 0.0
    %1467 = vmatmul.mubr.f32.gmra.mxu0 %v1375
    %v1468 = vpop.f32.mrf.mxu0
    %v1469 = vadd.f32 0.0, %v1468
    %v1470 = vpop.f32.mrf.mxu0
    %1471 = vmatprep.mubr.f32.mxu0 0.0
    %1472 = vmatmul.mubr.f32.gmra.mxu0 %v1378
    %v1473 = vpop.f32.mrf.mxu0
    %v1474 = vadd.f32 0.0, %v1473
    %v1475 = vpop.f32.mrf.mxu0
    %1476 = vmatprep.mubr.f32.mxu0 0.0
    %1477 = vmatmul.mubr.f32.gmra.mxu0 %v1381
    %v1478 = vpop.f32.mrf.mxu0
    %v1479 = vadd.f32 0.0, %v1478
    %v1480 = vpop.f32.mrf.mxu0
    %1481 = vmatprep.mubr.f32.mxu0 0.0
    %1482 = vmatmul.mubr.f32.gmra.mxu0 %v1384
    %v1483 = vpop.f32.mrf.mxu0
    %v1484 = vadd.f32 0.0, %v1483
    %v1485 = vpop.f32.mrf.mxu0
    %1486 = vmatprep.mubr.f32.mxu0 0.0
    %1487 = vmatmul.mubr.f32.gmra.mxu0 %v1387
    %v1488 = vpop.f32.mrf.mxu0
    %v1489 = vadd.f32 0.0, %v1488
    %v1490 = vpop.f32.mrf.mxu0
    %1491 = vmatprep.mubr.f32.mxu0 0.0
    %1492 = vmatmul.mubr.f32.gmra.mxu0 %v1390
    %v1493 = vpop.f32.mrf.mxu0
    %v1494 = vadd.f32 0.0, %v1493
    %v1495 = vpop.f32.mrf.mxu0
    %1496 = vdwg.mxu0
    %v1497 = vld [vmem:[%s4] sm:$0xff]
    %v1498 = vld [vmem:[%s4 + $0x8] sm:$0xff]
    %v1499 = vld [vmem:[%s4 + $0x10] sm:$0xff]
    %v1500 = vld [vmem:[%s4 + $0x18] sm:$0xff]
    %v1501 = vld [vmem:[%s5] sm:$0xff]
    %v1502 = vld [vmem:[%s5 + $0x8] sm:$0xff]
    %v1503 = vld [vmem:[%s5 + $0x10] sm:$0xff]
    %v1504 = vld [vmem:[%s5 + $0x18] sm:$0xff]
    %vm1505 = vcmask 261120
    %v1507 = vsel %vm1505, %v1459, 0
    %v1510 = vsel %vm1505, %v1464, 0
    %v1513 = vsel %vm1505, %v1469, 0
    %v1516 = vsel %vm1505, %v1474, 0
    %v1519 = vsel %vm1505, %v1479, 0
    %v1522 = vsel %vm1505, %v1484, 0
    %v1525 = vsel %vm1505, %v1489, 0
    %v1528 = vsel %vm1505, %v1494, 0
    %1530 = vmatprep.subr.mxu0 0.0
    %1531 = vmatpush1.msra.mxu0 0.0
    %1532 = vmatprep.subr.mxu0 0.0
    %1533 = vmatpush1.msra.mxu0 0.0
    %1534 = vmatprep.subr.mxu0 0.0
    %1535 = vmatpush1.msra.mxu0 0.0
    %1536 = vmatprep.subr.mxu0 0.0
    %1537 = vmatpush1.msra.mxu0 0.0
    %1538 = vmatprep.subr.mxu0 0.0
    %1539 = vmatpush1.msra.mxu0 0.0
    %1540 = vmatprep.subr.mxu0 0.0
    %1541 = vmatpush1.msra.mxu0 0.0
    %1542 = vmatprep.subr.mxu0 0.0
    %1543 = vmatpush1.msra.mxu0 0.0
    %1544 = vmatprep.subr.mxu0 0.0
    %1545 = vmatpush1.msra.mxu0 0.0
    %1546 = vmatprep.subr.mxu0 0.0
    %1547 = vmatpush1.msra.mxu0 0.0
    %1548 = vmatprep.subr.mxu0 0.0
    %1549 = vmatpush1.msra.mxu0 0.0
    %1550 = vmatprep.subr.mxu0 0.0
    %1551 = vmatpush1.msra.mxu0 0.0
    %1552 = vmatprep.subr.mxu0 0.0
    %1553 = vmatpush1.msra.mxu0 0.0
    %1554 = vmatprep.subr.mxu0 0.0
    %1555 = vmatpush1.msra.mxu0 %v1504
    %1556 = vmatprep.subr.mxu0 0.0
    %1557 = vmatpush1.msra.mxu0 %v1503
    %1558 = vmatprep.subr.mxu0 0.0
    %1559 = vmatpush1.msra.mxu0 %v1502
    %1560 = vmatprep.subr.mxu0 0.0
    %1561 = vmatpush1.msra.mxu0 %v1501
    %1562 = vmatprep.subr.mxu0 0.0
    %1563 = vmatpush2.msra.mxu0 0.0
    %1564 = vmatprep.subr.mxu0 0.0
    %1565 = vmatpush2.msra.mxu0 0.0
    %1566 = vmatprep.subr.mxu0 0.0
    %1567 = vmatpush2.msra.mxu0 0.0
    %1568 = vmatprep.subr.mxu0 0.0
    %1569 = vmatpush2.msra.mxu0 0.0
    %1570 = vmatprep.subr.mxu0 0.0
    %1571 = vmatpush2.msra.mxu0 0.0
    %1572 = vmatprep.subr.mxu0 0.0
    %1573 = vmatpush2.msra.mxu0 0.0
    %1574 = vmatprep.subr.mxu0 0.0
    %1575 = vmatpush2.msra.mxu0 0.0
    %1576 = vmatprep.subr.mxu0 0.0
    %1577 = vmatpush2.msra.mxu0 0.0
    %1578 = vmatprep.subr.mxu0 0.0
    %1579 = vmatpush2.msra.mxu0 0.0
    %1580 = vmatprep.subr.mxu0 0.0
    %1581 = vmatpush2.msra.mxu0 0.0
    %1582 = vmatprep.subr.mxu0 0.0
    %1583 = vmatpush2.msra.mxu0 0.0
    %1584 = vmatprep.subr.mxu0 0.0
    %1585 = vmatpush2.msra.mxu0 0.0
    %1586 = vmatprep.subr.mxu0 0.0
    %1587 = vmatpush2.msra.mxu0 0.0
    %1588 = vmatprep.subr.mxu0 0.0
    %1589 = vmatpush2.msra.mxu0 0.0
    %1590 = vmatprep.subr.mxu0 0.0
    %1591 = vmatpush2.msra.mxu0 0.0
    %1592 = vmatprep.subr.mxu0 0.0
    %1593 = vmatpush2.msra.mxu0 0.0
    %1594 = vmatprep.mubr.f32.mxu0 0.0
    %1595 = vmatmul.mubr.f32.gmra.mxu0 %v1507
    %v1596 = vpop.f32.mrf.mxu0
    %v1597 = vadd.f32 0.0, %v1596
    %v1598 = vpop.f32.mrf.mxu0
    %1599 = vmatprep.mubr.f32.mxu0 0.0
    %1600 = vmatmul.mubr.f32.gmra.mxu0 %v1510
    %v1601 = vpop.f32.mrf.mxu0
    %v1602 = vadd.f32 0.0, %v1601
    %v1603 = vpop.f32.mrf.mxu0
    %1604 = vmatprep.mubr.f32.mxu0 0.0
    %1605 = vmatmul.mubr.f32.gmra.mxu0 %v1513
    %v1606 = vpop.f32.mrf.mxu0
    %v1607 = vadd.f32 0.0, %v1606
    %v1608 = vpop.f32.mrf.mxu0
    %1609 = vmatprep.mubr.f32.mxu0 0.0
    %1610 = vmatmul.mubr.f32.gmra.mxu0 %v1516
    %v1611 = vpop.f32.mrf.mxu0
    %v1612 = vadd.f32 0.0, %v1611
    %v1613 = vpop.f32.mrf.mxu0
    %1614 = vmatprep.mubr.f32.mxu0 0.0
    %1615 = vmatmul.mubr.f32.gmra.mxu0 %v1519
    %v1616 = vpop.f32.mrf.mxu0
    %v1617 = vadd.f32 0.0, %v1616
    %v1618 = vpop.f32.mrf.mxu0
    %1619 = vmatprep.mubr.f32.mxu0 0.0
    %1620 = vmatmul.mubr.f32.gmra.mxu0 %v1522
    %v1621 = vpop.f32.mrf.mxu0
    %v1622 = vadd.f32 0.0, %v1621
    %v1623 = vpop.f32.mrf.mxu0
    %1624 = vmatprep.mubr.f32.mxu0 0.0
    %1625 = vmatmul.mubr.f32.gmra.mxu0 %v1525
    %v1626 = vpop.f32.mrf.mxu0
    %v1627 = vadd.f32 0.0, %v1626
    %v1628 = vpop.f32.mrf.mxu0
    %1629 = vmatprep.mubr.f32.mxu0 0.0
    %1630 = vmatmul.mubr.f32.gmra.mxu0 %v1528
    %v1631 = vpop.f32.mrf.mxu0
    %v1632 = vadd.f32 0.0, %v1631
    %v1633 = vpop.f32.mrf.mxu0
    %1634 = vdwg.mxu0
    %v1636 = vsel %vm1505, %v1290, 0
    %v1639 = vsel %vm1505, %v1295, 0
    %v1642 = vsel %vm1505, %v1300, 0
    %v1645 = vsel %vm1505, %v1305, 0
    %v1648 = vsel %vm1505, %v1310, 0
    %v1651 = vsel %vm1505, %v1315, 0
    %v1654 = vsel %vm1505, %v1320, 0
    %v1657 = vsel %vm1505, %v1325, 0
    %1659 = vmatprep.subr.mxu0 0.0
    %1660 = vmatpush1.msra.mxu0 0.0
    %1661 = vmatprep.subr.mxu0 0.0
    %1662 = vmatpush1.msra.mxu0 0.0
    %1663 = vmatprep.subr.mxu0 0.0
    %1664 = vmatpush1.msra.mxu0 0.0
    %1665 = vmatprep.subr.mxu0 0.0
    %1666 = vmatpush1.msra.mxu0 0.0
    %1667 = vmatprep.subr.mxu0 0.0
    %1668 = vmatpush1.msra.mxu0 0.0
    %1669 = vmatprep.subr.mxu0 0.0
    %1670 = vmatpush1.msra.mxu0 0.0
    %1671 = vmatprep.subr.mxu0 0.0
    %1672 = vmatpush1.msra.mxu0 0.0
    %1673 = vmatprep.subr.mxu0 0.0
    %1674 = vmatpush1.msra.mxu0 0.0
    %1675 = vmatprep.subr.mxu0 0.0
    %1676 = vmatpush1.msra.mxu0 0.0
    %1677 = vmatprep.subr.mxu0 0.0
    %1678 = vmatpush1.msra.mxu0 0.0
    %1679 = vmatprep.subr.mxu0 0.0
    %1680 = vmatpush1.msra.mxu0 0.0
    %1681 = vmatprep.subr.mxu0 0.0
    %1682 = vmatpush1.msra.mxu0 0.0
    %1683 = vmatprep.subr.mxu0 0.0
    %1684 = vmatpush1.msra.mxu0 %v1500
    %1685 = vmatprep.subr.mxu0 0.0
    %1686 = vmatpush1.msra.mxu0 %v1499
    %1687 = vmatprep.subr.mxu0 0.0
    %1688 = vmatpush1.msra.mxu0 %v1498
    %1689 = vmatprep.subr.mxu0 0.0
    %1690 = vmatpush1.msra.mxu0 %v1497
    %1691 = vmatprep.subr.mxu0 0.0
    %1692 = vmatpush2.msra.mxu0 0.0
    %1693 = vmatprep.subr.mxu0 0.0
    %1694 = vmatpush2.msra.mxu0 0.0
    %1695 = vmatprep.subr.mxu0 0.0
    %1696 = vmatpush2.msra.mxu0 0.0
    %1697 = vmatprep.subr.mxu0 0.0
    %1698 = vmatpush2.msra.mxu0 0.0
    %1699 = vmatprep.subr.mxu0 0.0
    %1700 = vmatpush2.msra.mxu0 0.0
    %1701 = vmatprep.subr.mxu0 0.0
    %1702 = vmatpush2.msra.mxu0 0.0
    %1703 = vmatprep.subr.mxu0 0.0
    %1704 = vmatpush2.msra.mxu0 0.0
    %1705 = vmatprep.subr.mxu0 0.0
    %1706 = vmatpush2.msra.mxu0 0.0
    %1707 = vmatprep.subr.mxu0 0.0
    %1708 = vmatpush2.msra.mxu0 0.0
    %1709 = vmatprep.subr.mxu0 0.0
    %1710 = vmatpush2.msra.mxu0 0.0
    %1711 = vmatprep.subr.mxu0 0.0
    %1712 = vmatpush2.msra.mxu0 0.0
    %1713 = vmatprep.subr.mxu0 0.0
    %1714 = vmatpush2.msra.mxu0 0.0
    %1715 = vmatprep.subr.mxu0 0.0
    %1716 = vmatpush2.msra.mxu0 0.0
    %1717 = vmatprep.subr.mxu0 0.0
    %1718 = vmatpush2.msra.mxu0 0.0
    %1719 = vmatprep.subr.mxu0 0.0
    %1720 = vmatpush2.msra.mxu0 0.0
    %1721 = vmatprep.subr.mxu0 0.0
    %1722 = vmatpush2.msra.mxu0 0.0
    %1723 = vmatprep.mubr.f32.mxu0 0.0
    %1724 = vmatmul.mubr.f32.gmra.mxu0 %v1636
    %v1725 = vpop.f32.mrf.mxu0
    %v1726 = vadd.f32 %v1597, %v1725
    %v1727 = vpop.f32.mrf.mxu0
    %1728 = vmatprep.mubr.f32.mxu0 0.0
    %1729 = vmatmul.mubr.f32.gmra.mxu0 %v1639
    %v1730 = vpop.f32.mrf.mxu0
    %v1731 = vadd.f32 %v1602, %v1730
    %v1732 = vpop.f32.mrf.mxu0
    %1733 = vmatprep.mubr.f32.mxu0 0.0
    %1734 = vmatmul.mubr.f32.gmra.mxu0 %v1642
    %v1735 = vpop.f32.mrf.mxu0
    %v1736 = vadd.f32 %v1607, %v1735
    %v1737 = vpop.f32.mrf.mxu0
    %1738 = vmatprep.mubr.f32.mxu0 0.0
    %1739 = vmatmul.mubr.f32.gmra.mxu0 %v1645
    %v1740 = vpop.f32.mrf.mxu0
    %v1741 = vadd.f32 %v1612, %v1740
    %v1742 = vpop.f32.mrf.mxu0
    %1743 = vmatprep.mubr.f32.mxu0 0.0
    %1744 = vmatmul.mubr.f32.gmra.mxu0 %v1648
    %v1745 = vpop.f32.mrf.mxu0
    %v1746 = vadd.f32 %v1617, %v1745
    %v1747 = vpop.f32.mrf.mxu0
    %1748 = vmatprep.mubr.f32.mxu0 0.0
    %1749 = vmatmul.mubr.f32.gmra.mxu0 %v1651
    %v1750 = vpop.f32.mrf.mxu0
    %v1751 = vadd.f32 %v1622, %v1750
    %v1752 = vpop.f32.mrf.mxu0
    %1753 = vmatprep.mubr.f32.mxu0 0.0
    %1754 = vmatmul.mubr.f32.gmra.mxu0 %v1654
    %v1755 = vpop.f32.mrf.mxu0
    %v1756 = vadd.f32 %v1627, %v1755
    %v1757 = vpop.f32.mrf.mxu0
    %1758 = vmatprep.mubr.f32.mxu0 0.0
    %1759 = vmatmul.mubr.f32.gmra.mxu0 %v1657
    %v1760 = vpop.f32.mrf.mxu0
    %v1761 = vadd.f32 %v1632, %v1760
    %v1762 = vpop.f32.mrf.mxu0
    %1763 = vdwg.mxu0
    %v1764 = vld [vmem:[%s6] sm:$0x1]
    %v1766 = vlaneseq
    %v1767 = vshrl.u32 %v1766, 7
    %v1768 = vsub.s32 0, %v1767
    %v1769 = vrot.slane %v1764, %v1768
    %v1771 = vadd.f32 %v1726, %v1769
    %v1772 = vadd.f32 %v1731, %v1769
    %v1773 = vadd.f32 %v1736, %v1769
    %v1774 = vadd.f32 %v1741, %v1769
    %v1775 = vadd.f32 %v1746, %v1769
    %v1776 = vadd.f32 %v1751, %v1769
    %v1777 = vadd.f32 %v1756, %v1769
    %v1778 = vadd.f32 %v1761, %v1769
    %1779 = vst [vmem:[#allocation4] sm:$0xff] %v1771
    %1780 = vst [vmem:[#allocation4 + $0x8] sm:$0xff] %v1772
    %1781 = vst [vmem:[#allocation4 + $0x10] sm:$0xff] %v1773
    %1782 = vst [vmem:[#allocation4 + $0x18] sm:$0xff] %v1774
    %1783 = vst [vmem:[#allocation4 + $0x20] sm:$0xff] %v1775
    %1784 = vst [vmem:[#allocation4 + $0x28] sm:$0xff] %v1776
    %1785 = vst [vmem:[#allocation4 + $0x30] sm:$0xff] %v1777
    %1786 = vst [vmem:[#allocation4 + $0x38] sm:$0xff] %v1778
    // Predicated region
    $region38: #{grulm_forward.1} parent=1 // pred_check
      _
    $region39: #{grulm_forward.1} parent=1 // pred_check_branch
      %1788 = sbr.rel (0) target = $region41
    $region40: #{grulm_forward.1} parent=1 // pred_region
      %s1790 = ssub.s32 1024, 1024
      %1791 = vsyncadd [#allocation5], %s1790
      %s1792 = sshll.u32 [#allocation4], 4
      %s1793 = int_to_ptr.vmem [resolvable:$true] %s1792
      %1798 = dma.vmem_to_hbm [thread:$0]  %s1793, 1024, %s9, [#allocation5], 128, 128, 8
    $region41: #{grulm_forward.1} parent=1 // pred_fallthru
      _
    // Predicated region
    $region42: #{grulm_forward.1} parent=1 // pred_check
      _
    $region43: #{grulm_forward.1} parent=1 // pred_check_branch
      %1800 = sbr.rel (0) target = $region45
    $region44: #{grulm_forward.1} parent=1 // pred_region
      %1801 = dma.done [#allocation5], 1024
    $region45: #{grulm_forward.1} parent=1 // pred_fallthru
      _
    %1802 = vsyncpa [#allocation5], 1

</llo_original>
